<compile_context>
chip_gen: v7x
topology: tpu7x:2x2x1
jax: 0.10.0
libtpu: 0.0.40
codegen_flags: <defaults>
</compile_context>

<pallas_src>
import functools
import math

import jax
import jax.numpy as jnp
from jax.experimental import pallas as pl
from jax.experimental.pallas import tpu as pltpu


def _pick_tile(dim, targets=(512, 256, 128)):
    """Largest target tile that divides `dim`; falls back to the full dim
    (block == full array dim always satisfies the (8,128) rule)."""
    for t in targets:
        if dim % t == 0:
            return t
    return dim


# ----------------------------------------------------------------------------
# Tiled matmul + bias (+ optional GELU / tanh) kernel
# ----------------------------------------------------------------------------

def _matmul_bias_act_kernel(x_ref, w_ref, b_ref, o_ref, acc_ref, *, act):
    @pl.when(pl.program_id(2) == 0)
    def _init():
        acc_ref[...] = jnp.zeros_like(acc_ref)

    acc_ref[...] += jnp.dot(x_ref[...], w_ref[...],
                            preferred_element_type=jnp.float32)

    @pl.when(pl.program_id(2) == pl.num_programs(2) - 1)
    def _finish():
        y = acc_ref[...] + b_ref[...]                      # f32 epilogue
        if act == "gelu":                                  # exact erf GELU
            y = 0.5 * y * (1.0 + jax.lax.erf(y * (1.0 / math.sqrt(2.0))))
        elif act == "tanh":
            y = jnp.tanh(y)
        o_ref[...] = y.astype(o_ref.dtype)


def matmul_bias_act(x, w, b, act="none", out_dtype=jnp.bfloat16):
    """x:(M,K) bf16 @ w:(K,N) bf16 + b:(N,) f32, optional activation."""
    M, K = x.shape
    Kw, N = w.shape
    assert K == Kw
    tm = _pick_tile(M)
    tn = _pick_tile(N)
    tk = _pick_tile(K)
    b2 = b.reshape(1, N).astype(jnp.float32)
    return pl.pallas_call(
        functools.partial(_matmul_bias_act_kernel, act=act),
        out_shape=jax.ShapeDtypeStruct((M, N), out_dtype),
        grid=(M // tm, N // tn, K // tk),
        in_specs=[
            pl.BlockSpec((tm, tk), lambda i, j, k: (i, k)),
            pl.BlockSpec((tk, tn), lambda i, j, k: (k, j)),
            pl.BlockSpec((1, tn), lambda i, j, k: (0, j)),
        ],
        out_specs=pl.BlockSpec((tm, tn), lambda i, j, k: (i, j)),
        scratch_shapes=[pltpu.VMEM((tm, tn), jnp.float32)],
        compiler_params=pltpu.CompilerParams(
            dimension_semantics=("parallel", "parallel", "arbitrary")),
    )(x, w, b2)


# ----------------------------------------------------------------------------
# Tiled matmul with fused bias + residual + LayerNorm epilogue
# (N is kept un-tiled inside a block so the LN row statistics are exact.)
# ----------------------------------------------------------------------------

def _matmul_res_ln_kernel(x_ref, w_ref, b_ref, r_ref, g_ref, be_ref,
                          o_ref, acc_ref, *, eps):
    @pl.when(pl.program_id(1) == 0)
    def _init():
        acc_ref[...] = jnp.zeros_like(acc_ref)

    acc_ref[...] += jnp.dot(x_ref[...], w_ref[...],
                            preferred_element_type=jnp.float32)

    @pl.when(pl.program_id(1) == pl.num_programs(1) - 1)
    def _finish():
        y = acc_ref[...] + b_ref[...] + r_ref[...].astype(jnp.float32)
        mu = jnp.mean(y, axis=-1, keepdims=True)
        var = jnp.mean((y - mu) ** 2, axis=-1, keepdims=True)
        y = (y - mu) * jax.lax.rsqrt(var + eps)
        o_ref[...] = (y * g_ref[...] + be_ref[...]).astype(o_ref.dtype)


def matmul_residual_ln(x, w, b, residual, gamma, beta, *,
                       eps=1e-12, out_dtype=jnp.bfloat16):
    M, K = x.shape
    Kw, N = w.shape
    assert K == Kw
    tm = _pick_tile(M)
    tk = _pick_tile(K)
    b2 = b.reshape(1, N).astype(jnp.float32)
    g2 = gamma.reshape(1, N).astype(jnp.float32)
    be2 = beta.reshape(1, N).astype(jnp.float32)
    return pl.pallas_call(
        functools.partial(_matmul_res_ln_kernel, eps=eps),
        out_shape=jax.ShapeDtypeStruct((M, N), out_dtype),
        grid=(M // tm, K // tk),
        in_specs=[
            pl.BlockSpec((tm, tk), lambda i, k: (i, k)),
            pl.BlockSpec((tk, N), lambda i, k: (k, 0)),
            pl.BlockSpec((1, N), lambda i, k: (0, 0)),
            pl.BlockSpec((tm, N), lambda i, k: (i, 0)),
            pl.BlockSpec((1, N), lambda i, k: (0, 0)),
            pl.BlockSpec((1, N), lambda i, k: (0, 0)),
        ],
        out_specs=pl.BlockSpec((tm, N), lambda i, k: (i, 0)),
        scratch_shapes=[pltpu.VMEM((tm, N), jnp.float32)],
        compiler_params=pltpu.CompilerParams(
            dimension_semantics=("parallel", "arbitrary")),
    )(x, w, b2, residual, g2, be2)


# ----------------------------------------------------------------------------
# Row-tiled LayerNorm (only used for the embedding LN; per-layer LNs are fused
# into the matmul epilogues above)
# ----------------------------------------------------------------------------

def _layernorm_kernel(x_ref, g_ref, b_ref, o_ref, *, eps):
    x = x_ref[...].astype(jnp.float32)
    mu = jnp.mean(x, axis=-1, keepdims=True)
    var = jnp.mean((x - mu) ** 2, axis=-1, keepdims=True)
    y = (x - mu) * jax.lax.rsqrt(var + eps)
    o_ref[...] = (y * g_ref[...] + b_ref[...]).astype(o_ref.dtype)


def layernorm(x, gamma, beta, *, eps=1e-12, out_dtype=jnp.bfloat16):
    M, H = x.shape
    tm = _pick_tile(M, (1024, 512, 256, 128))
    return pl.pallas_call(
        functools.partial(_layernorm_kernel, eps=eps),
        out_shape=jax.ShapeDtypeStruct((M, H), out_dtype),
        grid=(M // tm,),
        in_specs=[
            pl.BlockSpec((tm, H), lambda i: (i, 0)),
            pl.BlockSpec((1, H), lambda i: (0, 0)),
            pl.BlockSpec((1, H), lambda i: (0, 0)),
        ],
        out_specs=pl.BlockSpec((tm, H), lambda i: (i, 0)),
        compiler_params=pltpu.CompilerParams(
            dimension_semantics=("parallel",)),
    )(x, gamma.reshape(1, H).astype(jnp.float32),
      beta.reshape(1, H).astype(jnp.float32))


# ----------------------------------------------------------------------------
# Multi-head attention straight from the fused (B, S, 3H) QKV tensor.
# One grid step = one batch item, all heads (amortizes per-step overhead and
# avoids any head-transpose glue in HBM).
# TODO(synk): for very long sequences a flash-style (tq, tk) tiling of the
#             score matrix should replace the full (S, S) softmax per step.
# ----------------------------------------------------------------------------

def _attn_kernel(qkv_ref, mask_ref, o_ref, *, n_heads, head_dim, scale):
    H = n_heads * head_dim
    qkv = qkv_ref[0]                    # (S, 3H) bf16
    mask = mask_ref[0]                  # (1, S)  f32 additive bias
    outs = []
    for h in range(n_heads):            # static unroll over heads
        qh = qkv[:, h * head_dim:(h + 1) * head_dim]
        kh = qkv[:, H + h * head_dim:H + (h + 1) * head_dim]
        vh = qkv[:, 2 * H + h * head_dim:2 * H + (h + 1) * head_dim]
        # contract head_dim directly -> no explicit K^T materialization
        s = jax.lax.dot_general(qh, kh, (((1,), (1,)), ((), ())),
                                preferred_element_type=jnp.float32)
        s = s * scale + mask
        m = jnp.max(s, axis=-1, keepdims=True)
        p = jnp.exp(s - m)
        l = jnp.sum(p, axis=-1, keepdims=True)
        ctx = jnp.dot(p.astype(qkv.dtype), vh,
                      preferred_element_type=jnp.float32)
        outs.append(ctx * pl.reciprocal(l, approx=True))
    # single lane-dense (S, H) store
    o_ref[0] = jnp.concatenate(outs, axis=-1).astype(o_ref.dtype)


def mha_attention(qkv, mask_bias, *, n_heads):
    """qkv: (B, S, 3H) bf16; mask_bias: (B, 1, S) f32 additive (-1e9 at pads)."""
    B, S, H3 = qkv.shape
    H = H3 // 3
    head_dim = H // n_heads
    scale = 1.0 / math.sqrt(head_dim)
    return pl.pallas_call(
        functools.partial(_attn_kernel, n_heads=n_heads,
                          head_dim=head_dim, scale=scale),
        out_shape=jax.ShapeDtypeStruct((B, S, H), qkv.dtype),
        grid=(B,),
        in_specs=[
            pl.BlockSpec((1, S, H3), lambda b: (b, 0, 0)),
            pl.BlockSpec((1, 1, S), lambda b: (b, 0, 0)),
        ],
        out_specs=pl.BlockSpec((1, S, H), lambda b: (b, 0, 0)),
        compiler_params=pltpu.CompilerParams(
            dimension_semantics=("parallel",)),
    )(qkv, mask_bias)


# ----------------------------------------------------------------------------
# BERT-style transformer + Encoder wrapper (params = plain dicts)
# ----------------------------------------------------------------------------

def init_params(key, *, vocab, hidden, n_layers, n_heads, intermediate,
                max_pos, feature_dim):
    def nrm(k, shape, std=0.02, dtype=jnp.float32):
        return (std * jax.random.normal(k, shape, dtype=jnp.float32)).astype(dtype)

    keys = iter(jax.random.split(key, 8 + n_layers * 8))
    p = {
        "word_emb": nrm(next(keys), (vocab, hidden)),
        "pos_emb": nrm(next(keys), (max_pos, hidden)),
        "type_emb": nrm(next(keys), (2, hidden)),
        "emb_ln_g": jnp.ones((hidden,), jnp.float32),
        "emb_ln_b": jnp.zeros((hidden,), jnp.float32),
        "pooler_w": nrm(next(keys), (hidden, hidden), dtype=jnp.bfloat16),
        "pooler_b": jnp.zeros((hidden,), jnp.float32),
        "connector_w": nrm(next(keys), (hidden, feature_dim), dtype=jnp.bfloat16),
        "layers": [],
    }
    for _ in range(n_layers):
        lp = {
            # fused QKV projection: one (H, 3H) matmul instead of three
            "w_qkv": nrm(next(keys), (hidden, 3 * hidden), dtype=jnp.bfloat16),
            "b_qkv": jnp.zeros((3 * hidden,), jnp.float32),
            "wo": nrm(next(keys), (hidden, hidden), dtype=jnp.bfloat16),
            "bo": jnp.zeros((hidden,), jnp.float32),
            "ln1_g": jnp.ones((hidden,), jnp.float32),
            "ln1_b": jnp.zeros((hidden,), jnp.float32),
            "wi": nrm(next(keys), (hidden, intermediate), dtype=jnp.bfloat16),
            "bi": jnp.zeros((intermediate,), jnp.float32),
            "wf": nrm(next(keys), (intermediate, hidden), dtype=jnp.bfloat16),
            "bf": jnp.zeros((hidden,), jnp.float32),
            "ln2_g": jnp.ones((hidden,), jnp.float32),
            "ln2_b": jnp.zeros((hidden,), jnp.float32),
        }
        p["layers"].append(lp)
    return p


def transformer_forward(params, input_ids, attention_mask, *, n_heads):
    B, S = input_ids.shape
    H = params["word_emb"].shape[1]

    # --- embeddings ---
    # TODO(synk): embedding gather stays plain-JAX (XLA dynamic-gather); a
    #             Pallas gather would need manual per-row DMA for no gain here.
    # TODO(synk): token_type_ids assumed all-zero (matches default BERT usage).
    we = jnp.take(params["word_emb"], input_ids, axis=0)          # (B,S,H) f32
    pe = params["pos_emb"][:S][None, :, :]
    te = params["type_emb"][0][None, None, :]
    emb = (we + pe + te).reshape(B * S, H).astype(jnp.bfloat16)   # bf16 to LN
    h = layernorm(emb, params["emb_ln_g"], params["emb_ln_b"])    # bf16

    # additive attention mask bias: (B, 1, S)  (no per-head replication)
    mask_bias = ((1.0 - attention_mask.astype(jnp.float32)) * -1e9
                 ).reshape(B, 1, S)

    for lp in params["layers"]:
        qkv = matmul_bias_act(h, lp["w_qkv"], lp["b_qkv"])        # (B*S, 3H)
        ctx = mha_attention(qkv.reshape(B, S, 3 * H), mask_bias,
                            n_heads=n_heads).reshape(B * S, H)
        h = matmul_residual_ln(ctx, lp["wo"], lp["bo"], h,
                               lp["ln1_g"], lp["ln1_b"])          # attn + LN1
        ffn = matmul_bias_act(h, lp["wi"], lp["bi"], act="gelu")  # (B*S, I)
        h = matmul_residual_ln(ffn, lp["wf"], lp["bf"], h,
                               lp["ln2_g"], lp["ln2_b"])          # FFN + LN2

    last_hidden_state = h.reshape(B, S, H)
    cls_hidden = last_hidden_state[:, 0, :]                       # (B, H)
    cls_pooled = matmul_bias_act(cls_hidden, params["pooler_w"],
                                 params["pooler_b"], act="tanh")  # (B, H)
    return last_hidden_state, cls_pooled


def encoder_forward(params, input_ids, attention_mask=None, *,
                    pad_token_id, n_heads):
    if attention_mask is None:
        attention_mask = (input_ids != pad_token_id).astype(jnp.float32)
    last_hidden_state, cls_pooled = transformer_forward(
        params, input_ids, attention_mask, n_heads=n_heads)
    # connector_layer: Linear(hidden -> feature_dim, bias=False)
    feat_dim = params["connector_w"].shape[1]
    zero_b = jnp.zeros((feat_dim,), jnp.float32)
    feature = matmul_bias_act(cls_pooled, params["connector_w"], zero_b,
                              act="none", out_dtype=jnp.float32)
    return feature, last_hidden_state.astype(jnp.float32)


# ----------------------------------------------------------------------------
if __name__ == "__main__":
    # small config consistent with the forward pass
    VOCAB, HIDDEN, N_LAYERS, N_HEADS = 100, 32, 2, 2
    INTERMEDIATE, MAX_POS, FEATURE_DIM = 64, 16, 16
    B, S = 2, 8
    CLS_TOKEN_ID, PAD_TOKEN_ID = 1, 0

    key = jax.random.PRNGKey(0)
    k_param, k_ids = jax.random.split(key)
    params = init_params(k_param, vocab=VOCAB, hidden=HIDDEN,
                         n_layers=N_LAYERS, n_heads=N_HEADS,
                         intermediate=INTERMEDIATE, max_pos=MAX_POS,
                         feature_dim=FEATURE_DIM)

    input_ids = jax.random.randint(k_ids, (B, S), 2, VOCAB, dtype=jnp.int32)
    input_ids = input_ids.at[:, 0].set(CLS_TOKEN_ID)        # CLS first
    input_ids = input_ids.at[1, 6:].set(PAD_TOKEN_ID)       # pads at end of row 1

    fwd = jax.jit(functools.partial(encoder_forward,
                                    pad_token_id=PAD_TOKEN_ID,
                                    n_heads=N_HEADS))
    feature, last_hidden_state = fwd(params, input_ids)
    jax.block_until_ready((feature, last_hidden_state))

    assert feature.shape == (B, FEATURE_DIM)
    assert last_hidden_state.shape == (B, S, HIDDEN)
    assert bool(jnp.all(jnp.isfinite(feature)))
    assert bool(jnp.all(jnp.isfinite(last_hidden_state)))
    print("KERNEL_OK")
</pallas_src>

<mosaic_0001>
module attributes {stable_mosaic.version = 11 : i64} {
  func.func @_matmul_bias_act_kernel(%arg0: i32, %arg1: i32, %arg2: i32, %arg3: memref<16x32xbf16, #tpu.memory_space<vmem>>, %arg4: memref<32x96xbf16, #tpu.memory_space<vmem>>, %arg5: memref<1x96xf32, #tpu.memory_space<vmem>>, %arg6: memref<16x96xbf16, #tpu.memory_space<vmem>>, %arg7: memref<16x96xf32, #tpu.memory_space<vmem>>) attributes {dimension_semantics = [#tpu.dimension_semantics<parallel>, #tpu.dimension_semantics<parallel>, #tpu.dimension_semantics<arbitrary>], iteration_bounds = array<i64: 1, 1, 1>, scalar_prefetch = 0 : i64, scratch_operands = 1 : i64, tpu.core_type = #tpu.core_type<tc>, window_params = [{transform_indices = @transform_0, window_bounds = array<i64: 16, 32>}, {transform_indices = @transform_1, window_bounds = array<i64: 32, 96>}, {transform_indices = @transform_2, window_bounds = array<i64: 1, 96>}, {transform_indices = @transform_3, window_bounds = array<i64: 16, 96>}]} {
    %c0_i32 = arith.constant 0 : i32
    %0 = arith.cmpi eq, %arg2, %c0_i32 : i32
    %1 = arith.extui %0 : i1 to i32
    %c0_i32_0 = arith.constant 0 : i32
    %2 = arith.cmpi ne, %1, %c0_i32_0 : i32
    scf.if %2 {
      %cst_10 = arith.constant 0.000000e+00 : f32
      %12 = vector.broadcast %cst_10 : f32 to vector<16x96xf32>
      %c0_11 = arith.constant 0 : index
      %c0_12 = arith.constant 0 : index
      %13 = vector.load %arg7[%c0_11, %c0_12] : memref<16x96xf32, #tpu.memory_space<vmem>>, vector<16x96xf32>
      tpu.vector_store %arg7[%c0_11, %c0_12], %12 {strides = array<i32>} : memref<16x96xf32, #tpu.memory_space<vmem>>, vector<16x96xf32>,
    } else {
    }
    %c0 = arith.constant 0 : index
    %c0_1 = arith.constant 0 : index
    %3 = vector.load %arg7[%c0, %c0_1] : memref<16x96xf32, #tpu.memory_space<vmem>>, vector<16x96xf32>
    %c0_2 = arith.constant 0 : index
    %c0_3 = arith.constant 0 : index
    %4 = vector.load %arg3[%c0_2, %c0_3] : memref<16x32xbf16, #tpu.memory_space<vmem>>, vector<16x32xbf16>
    %c0_4 = arith.constant 0 : index
    %c0_5 = arith.constant 0 : index
    %5 = vector.load %arg4[%c0_4, %c0_5] : memref<32x96xbf16, #tpu.memory_space<vmem>>, vector<32x96xbf16>
    %cst = arith.constant dense<0.000000e+00> : vector<16x96xf32>
    %6 = tpu.matmul %4, %5, %cst {dimension_numbers = #tpu.dot_dimension_numbers<[1], [0], [0], [1], [0, 0, 1, 1], [], []>} : vector<16x32xbf16>, vector<32x96xbf16>, vector<16x96xf32> -> vector<16x96xf32>
    %7 = arith.addf %3, %6 : vector<16x96xf32>
    %c0_6 = arith.constant 0 : index
    %c0_7 = arith.constant 0 : index
    %8 = vector.load %arg7[%c0_6, %c0_7] : memref<16x96xf32, #tpu.memory_space<vmem>>, vector<16x96xf32>
    tpu.vector_store %arg7[%c0_6, %c0_7], %7 {strides = array<i32>} : memref<16x96xf32, #tpu.memory_space<vmem>>, vector<16x96xf32>,
    %c0_i32_8 = arith.constant 0 : i32
    %9 = arith.cmpi eq, %arg2, %c0_i32_8 : i32
    %10 = arith.extui %9 : i1 to i32
    %c0_i32_9 = arith.constant 0 : i32
    %11 = arith.cmpi ne, %10, %c0_i32_9 : i32
    scf.if %11 {
      %c0_10 = arith.constant 0 : index
      %c0_11 = arith.constant 0 : index
      %12 = vector.load %arg7[%c0_10, %c0_11] : memref<16x96xf32, #tpu.memory_space<vmem>>, vector<16x96xf32>
      %c0_12 = arith.constant 0 : index
      %c0_13 = arith.constant 0 : index
      %13 = vector.load %arg5[%c0_12, %c0_13] : memref<1x96xf32, #tpu.memory_space<vmem>>, vector<1x96xf32>
      %14 = vector.broadcast %13 : vector<1x96xf32> to vector<16x96xf32>
      %15 = arith.addf %12, %14 : vector<16x96xf32>
      %16 = arith.truncf %15 : vector<16x96xf32> to vector<16x96xbf16>
      %c0_14 = arith.constant 0 : index
      %c0_15 = arith.constant 0 : index
      %17 = vector.load %arg6[%c0_14, %c0_15] : memref<16x96xbf16, #tpu.memory_space<vmem>>, vector<16x96xbf16>
      tpu.vector_store %arg6[%c0_14, %c0_15], %16 {strides = array<i32>} : memref<16x96xbf16, #tpu.memory_space<vmem>>, vector<16x96xbf16>,
    } else {
    }
    return
  }
  func.func @transform_0(%arg0: i32, %arg1: i32, %arg2: i32) -> (i32, i32) {
    %c0_i32 = arith.constant 0 : i32
    return %arg0, %arg2 : i32, i32
  }
  func.func @transform_1(%arg0: i32, %arg1: i32, %arg2: i32) -> (i32, i32) {
    %c0_i32 = arith.constant 0 : i32
    return %arg2, %arg1 : i32, i32
  }
  func.func @transform_2(%arg0: i32, %arg1: i32, %arg2: i32) -> (i32, i32) {
    %c0_i32 = arith.constant 0 : i32
    %c0_i32_0 = arith.constant 0 : i32
    return %c0_i32, %arg1 : i32, i32
  }
  func.func @transform_3(%arg0: i32, %arg1: i32, %arg2: i32) -> (i32, i32) {
    %c0_i32 = arith.constant 0 : i32
    return %arg0, %arg1 : i32, i32
  }
}

module attributes {stable_mosaic.version = 11 : i64} {
  func.func @_layernorm_kernel(%arg0: i32, %arg1: memref<16x32xbf16, #tpu.memory_space<vmem>>, %arg2: memref<1x32xf32, #tpu.memory_space<vmem>>, %arg3: memref<1x32xf32, #tpu.memory_space<vmem>>, %arg4: memref<16x32xbf16, #tpu.memory_space<vmem>>) attributes {dimension_semantics = [#tpu.dimension_semantics<parallel>], iteration_bounds = array<i64: 1>, scalar_prefetch = 0 : i64, scratch_operands = 0 : i64, tpu.core_type = #tpu.core_type<tc>, window_params = [{transform_indices = @transform_0, window_bounds = array<i64: 16, 32>}, {pipeline_mode = #tpu.pipeline_mode<synchronous>, transform_indices = @transform_1, window_bounds = array<i64: 1, 32>}, {pipeline_mode = #tpu.pipeline_mode<synchronous>, transform_indices = @transform_2, window_bounds = array<i64: 1, 32>}, {transform_indices = @transform_3, window_bounds = array<i64: 16, 32>}]} {
    %c0 = arith.constant 0 : index
    %c0_0 = arith.constant 0 : index
    %0 = vector.load %arg1[%c0, %c0_0] : memref<16x32xbf16, #tpu.memory_space<vmem>>, vector<16x32xbf16>
    %1 = arith.extf %0 : vector<16x32xbf16> to vector<16x32xf32>
    %cst = arith.constant dense<0.000000e+00> : vector<16xf32>
    %2 = vector.multi_reduction <add>, %1, %cst [1] : vector<16x32xf32> to vector<16xf32>
    %3 = vector.shape_cast %2 : vector<16xf32> to vector<16x1xf32>
    %cst_1 = arith.constant 3.200000e+01 : f32
    %4 = vector.broadcast %cst_1 : f32 to vector<16x1xf32>
    %5 = arith.divf %3, %4 : vector<16x1xf32>
    %6 = vector.broadcast %5 : vector<16x1xf32> to vector<16x32xf32>
    %7 = arith.subf %1, %6 : vector<16x32xf32>
    %8 = arith.mulf %7, %7 : vector<16x32xf32>
    %cst_2 = arith.constant dense<0.000000e+00> : vector<16xf32>
    %9 = vector.multi_reduction <add>, %8, %cst_2 [1] : vector<16x32xf32> to vector<16xf32>
    %10 = vector.shape_cast %9 : vector<16xf32> to vector<16x1xf32>
    %cst_3 = arith.constant 3.200000e+01 : f32
    %11 = vector.broadcast %cst_3 : f32 to vector<16x1xf32>
    %12 = arith.divf %10, %11 : vector<16x1xf32>
    %13 = vector.broadcast %5 : vector<16x1xf32> to vector<16x32xf32>
    %14 = arith.subf %1, %13 : vector<16x32xf32>
    %cst_4 = arith.constant 9.99999996E-13 : f32
    %15 = vector.broadcast %cst_4 : f32 to vector<16x1xf32>
    %16 = arith.addf %12, %15 : vector<16x1xf32>
    %17 = math.rsqrt %16 : vector<16x1xf32>
    %18 = vector.broadcast %17 : vector<16x1xf32> to vector<16x32xf32>
    %19 = arith.mulf %14, %18 : vector<16x32xf32>
    %c0_5 = arith.constant 0 : index
    %c0_6 = arith.constant 0 : index
    %20 = vector.load %arg2[%c0_5, %c0_6] : memref<1x32xf32, #tpu.memory_space<vmem>>, vector<1x32xf32>
    %21 = vector.broadcast %20 : vector<1x32xf32> to vector<16x32xf32>
    %22 = arith.mulf %19, %21 : vector<16x32xf32>
    %c0_7 = arith.constant 0 : index
    %c0_8 = arith.constant 0 : index
    %23 = vector.load %arg3[%c0_7, %c0_8] : memref<1x32xf32, #tpu.memory_space<vmem>>, vector<1x32xf32>
    %24 = vector.broadcast %23 : vector<1x32xf32> to vector<16x32xf32>
    %25 = arith.addf %22, %24 : vector<16x32xf32>
    %26 = arith.truncf %25 : vector<16x32xf32> to vector<16x32xbf16>
    %c0_9 = arith.constant 0 : index
    %c0_10 = arith.constant 0 : index
    %27 = vector.load %arg4[%c0_9, %c0_10] : memref<16x32xbf16, #tpu.memory_space<vmem>>, vector<16x32xbf16>
    tpu.vector_store %arg4[%c0_9, %c0_10], %26 {strides = array<i32>} : memref<16x32xbf16, #tpu.memory_space<vmem>>, vector<16x32xbf16>,
    return
  }
  func.func @transform_0(%arg0: i32) -> (i32, i32) {
    %c0_i32 = arith.constant 0 : i32
    %c0_i32_0 = arith.constant 0 : i32
    return %arg0, %c0_i32 : i32, i32
  }
  func.func @transform_1(%arg0: i32) -> (i32, i32) {
    %c0_i32 = arith.constant 0 : i32
    %c0_i32_0 = arith.constant 0 : i32
    %c0_i32_1 = arith.constant 0 : i32
    return %c0_i32, %c0_i32_0 : i32, i32
  }
  func.func @transform_2(%arg0: i32) -> (i32, i32) {
    %c0_i32 = arith.constant 0 : i32
    %c0_i32_0 = arith.constant 0 : i32
    %c0_i32_1 = arith.constant 0 : i32
    return %c0_i32, %c0_i32_0 : i32, i32
  }
  func.func @transform_3(%arg0: i32) -> (i32, i32) {
    %c0_i32 = arith.constant 0 : i32
    %c0_i32_0 = arith.constant 0 : i32
    return %arg0, %c0_i32 : i32, i32
  }
}

module attributes {stable_mosaic.version = 11 : i64} {
  func.func @_attn_kernel(%arg0: i32, %arg1: memref<1x8x96xbf16, #tpu.memory_space<vmem>>, %arg2: memref<1x1x8xf32, #tpu.memory_space<vmem>>, %arg3: memref<1x8x32xbf16, #tpu.memory_space<vmem>>) attributes {dimension_semantics = [#tpu.dimension_semantics<parallel>], iteration_bounds = array<i64: 2>, scalar_prefetch = 0 : i64, scratch_operands = 0 : i64, tpu.core_type = #tpu.core_type<tc>, window_params = [{transform_indices = @transform_0, window_bounds = array<i64: 1, 8, 96>}, {transform_indices = @transform_1, window_bounds = array<i64: 1, 1, 8>}, {transform_indices = @transform_2, window_bounds = array<i64: 1, 8, 32>}]} {
    %c0 = arith.constant 0 : index
    %c0_0 = arith.constant 0 : index
    %c0_1 = arith.constant 0 : index
    %0 = vector.load %arg1[%c0, %c0_0, %c0_1] : memref<1x8x96xbf16, #tpu.memory_space<vmem>>, vector<1x8x96xbf16>
    %1 = vector.shape_cast %0 : vector<1x8x96xbf16> to vector<8x96xbf16>
    %c0_2 = arith.constant 0 : index
    %c0_3 = arith.constant 0 : index
    %c0_4 = arith.constant 0 : index
    %2 = vector.load %arg2[%c0_2, %c0_3, %c0_4] : memref<1x1x8xf32, #tpu.memory_space<vmem>>, vector<1x1x8xf32>
    %3 = vector.shape_cast %2 : vector<1x1x8xf32> to vector<1x8xf32>
    %4 = vector.extract_strided_slice %1 {offsets = [0, 0], sizes = [8, 16], strides = [1, 1]} : vector<8x96xbf16> to vector<8x16xbf16>
    %5 = vector.extract_strided_slice %1 {offsets = [0, 32], sizes = [8, 16], strides = [1, 1]} : vector<8x96xbf16> to vector<8x16xbf16>
    %6 = vector.extract_strided_slice %1 {offsets = [0, 64], sizes = [8, 16], strides = [1, 1]} : vector<8x96xbf16> to vector<8x16xbf16>
    %cst = arith.constant dense<0.000000e+00> : vector<8x8xf32>
    %7 = tpu.matmul %4, %5, %cst {dimension_numbers = #tpu.dot_dimension_numbers<[1], [1], [0], [0], [0, 0, 1, 0], [], []>} : vector<8x16xbf16>, vector<8x16xbf16>, vector<8x8xf32> -> vector<8x8xf32>
    %cst_5 = arith.constant 2.500000e-01 : f32
    %8 = vector.broadcast %cst_5 : f32 to vector<8x8xf32>
    %9 = arith.mulf %7, %8 : vector<8x8xf32>
    %10 = vector.broadcast %3 : vector<1x8xf32> to vector<8x8xf32>
    %11 = arith.addf %9, %10 : vector<8x8xf32>
    %cst_6 = arith.constant dense<0xFF800000> : vector<8xf32>
    %12 = vector.multi_reduction <maximumf>, %11, %cst_6 [1] : vector<8x8xf32> to vector<8xf32>
    %13 = vector.shape_cast %12 : vector<8xf32> to vector<8x1xf32>
    %14 = vector.broadcast %13 : vector<8x1xf32> to vector<8x8xf32>
    %15 = arith.subf %11, %14 : vector<8x8xf32>
    %16 = math.exp %15 : vector<8x8xf32>
    %cst_7 = arith.constant dense<0.000000e+00> : vector<8xf32>
    %17 = vector.multi_reduction <add>, %16, %cst_7 [1] : vector<8x8xf32> to vector<8xf32>
    %18 = vector.shape_cast %17 : vector<8xf32> to vector<8x1xf32>
    %19 = arith.truncf %16 : vector<8x8xf32> to vector<8x8xbf16>
    %cst_8 = arith.constant dense<0.000000e+00> : vector<8x16xf32>
    %20 = tpu.matmul %19, %6, %cst_8 {dimension_numbers = #tpu.dot_dimension_numbers<[1], [0], [0], [1], [0, 0, 1, 1], [], []>} : vector<8x8xbf16>, vector<8x16xbf16>, vector<8x16xf32> -> vector<8x16xf32>
    %21 = tpu.reciprocal %18 {approx = true} : vector<8x1xf32> -> vector<8x1xf32>
    %22 = vector.broadcast %21 : vector<8x1xf32> to vector<8x16xf32>
    %23 = arith.mulf %20, %22 : vector<8x16xf32>
    %24 = vector.extract_strided_slice %1 {offsets = [0, 16], sizes = [8, 16], strides = [1, 1]} : vector<8x96xbf16> to vector<8x16xbf16>
    %25 = vector.extract_strided_slice %1 {offsets = [0, 48], sizes = [8, 16], strides = [1, 1]} : vector<8x96xbf16> to vector<8x16xbf16>
    %26 = vector.extract_strided_slice %1 {offsets = [0, 80], sizes = [8, 16], strides = [1, 1]} : vector<8x96xbf16> to vector<8x16xbf16>
    %cst_9 = arith.constant dense<0.000000e+00> : vector<8x8xf32>
    %27 = tpu.matmul %24, %25, %cst_9 {dimension_numbers = #tpu.dot_dimension_numbers<[1], [1], [0], [0], [0, 0, 1, 0], [], []>} : vector<8x16xbf16>, vector<8x16xbf16>, vector<8x8xf32> -> vector<8x8xf32>
    %cst_10 = arith.constant 2.500000e-01 : f32
    %28 = vector.broadcast %cst_10 : f32 to vector<8x8xf32>
    %29 = arith.mulf %27, %28 : vector<8x8xf32>
    %30 = vector.broadcast %3 : vector<1x8xf32> to vector<8x8xf32>
    %31 = arith.addf %29, %30 : vector<8x8xf32>
    %cst_11 = arith.constant dense<0xFF800000> : vector<8xf32>
    %32 = vector.multi_reduction <maximumf>, %31, %cst_11 [1] : vector<8x8xf32> to vector<8xf32>
    %33 = vector.shape_cast %32 : vector<8xf32> to vector<8x1xf32>
    %34 = vector.broadcast %33 : vector<8x1xf32> to vector<8x8xf32>
    %35 = arith.subf %31, %34 : vector<8x8xf32>
    %36 = math.exp %35 : vector<8x8xf32>
    %cst_12 = arith.constant dense<0.000000e+00> : vector<8xf32>
    %37 = vector.multi_reduction <add>, %36, %cst_12 [1] : vector<8x8xf32> to vector<8xf32>
    %38 = vector.shape_cast %37 : vector<8xf32> to vector<8x1xf32>
    %39 = arith.truncf %36 : vector<8x8xf32> to vector<8x8xbf16>
    %cst_13 = arith.constant dense<0.000000e+00> : vector<8x16xf32>
    %40 = tpu.matmul %39, %26, %cst_13 {dimension_numbers = #tpu.dot_dimension_numbers<[1], [0], [0], [1], [0, 0, 1, 1], [], []>} : vector<8x8xbf16>, vector<8x16xbf16>, vector<8x16xf32> -> vector<8x16xf32>
    %41 = tpu.reciprocal %38 {approx = true} : vector<8x1xf32> -> vector<8x1xf32>
    %42 = vector.broadcast %41 : vector<8x1xf32> to vector<8x16xf32>
    %43 = arith.mulf %40, %42 : vector<8x16xf32>
    %44 = tpu.concatenate %23, %43 in 1 : vector<8x16xf32>, vector<8x16xf32> -> vector<8x32xf32>
    %45 = arith.truncf %44 : vector<8x32xf32> to vector<8x32xbf16>
    %c0_14 = arith.constant 0 : index
    %c0_15 = arith.constant 0 : index
    %c0_16 = arith.constant 0 : index
    %46 = vector.load %arg3[%c0_14, %c0_15, %c0_16] : memref<1x8x32xbf16, #tpu.memory_space<vmem>>, vector<1x8x32xbf16>
    %47 = vector.shape_cast %46 : vector<1x8x32xbf16> to vector<8x32xbf16>
    %48 = vector.shape_cast %45 : vector<8x32xbf16> to vector<1x8x32xbf16>
    tpu.vector_store %arg3[%c0_14, %c0_15, %c0_16], %48 {strides = array<i32>} : memref<1x8x32xbf16, #tpu.memory_space<vmem>>, vector<1x8x32xbf16>,
    return
  }
  func.func @transform_0(%arg0: i32) -> (i32, i32, i32) {
    %c0_i32 = arith.constant 0 : i32
    %c0_i32_0 = arith.constant 0 : i32
    %c0_i32_1 = arith.constant 0 : i32
    return %arg0, %c0_i32, %c0_i32_0 : i32, i32, i32
  }
  func.func @transform_1(%arg0: i32) -> (i32, i32, i32) {
    %c0_i32 = arith.constant 0 : i32
    %c0_i32_0 = arith.constant 0 : i32
    %c0_i32_1 = arith.constant 0 : i32
    return %arg0, %c0_i32, %c0_i32_0 : i32, i32, i32
  }
  func.func @transform_2(%arg0: i32) -> (i32, i32, i32) {
    %c0_i32 = arith.constant 0 : i32
    %c0_i32_0 = arith.constant 0 : i32
    %c0_i32_1 = arith.constant 0 : i32
    return %arg0, %c0_i32, %c0_i32_0 : i32, i32, i32
  }
}

module attributes {stable_mosaic.version = 11 : i64} {
  func.func @_matmul_res_ln_kernel(%arg0: i32, %arg1: i32, %arg2: memref<16x32xbf16, #tpu.memory_space<vmem>>, %arg3: memref<32x32xbf16, #tpu.memory_space<vmem>>, %arg4: memref<1x32xf32, #tpu.memory_space<vmem>>, %arg5: memref<16x32xbf16, #tpu.memory_space<vmem>>, %arg6: memref<1x32xf32, #tpu.memory_space<vmem>>, %arg7: memref<1x32xf32, #tpu.memory_space<vmem>>, %arg8: memref<16x32xbf16, #tpu.memory_space<vmem>>, %arg9: memref<16x32xf32, #tpu.memory_space<vmem>>) attributes {dimension_semantics = [#tpu.dimension_semantics<parallel>, #tpu.dimension_semantics<arbitrary>], iteration_bounds = array<i64: 1, 1>, scalar_prefetch = 0 : i64, scratch_operands = 1 : i64, tpu.core_type = #tpu.core_type<tc>, window_params = [{transform_indices = @transform_0, window_bounds = array<i64: 16, 32>}, {transform_indices = @transform_1, window_bounds = array<i64: 32, 32>}, {pipeline_mode = #tpu.pipeline_mode<synchronous>, transform_indices = @transform_2, window_bounds = array<i64: 1, 32>}, {transform_indices = @transform_3, window_bounds = array<i64: 16, 32>}, {pipeline_mode = #tpu.pipeline_mode<synchronous>, transform_indices = @transform_4, window_bounds = array<i64: 1, 32>}, {pipeline_mode = #tpu.pipeline_mode<synchronous>, transform_indices = @transform_5, window_bounds = array<i64: 1, 32>}, {transform_indices = @transform_6, window_bounds = array<i64: 16, 32>}]} {
    %c0_i32 = arith.constant 0 : i32
    %0 = arith.cmpi eq, %arg1, %c0_i32 : i32
    %1 = arith.extui %0 : i1 to i32
    %c0_i32_0 = arith.constant 0 : i32
    %2 = arith.cmpi ne, %1, %c0_i32_0 : i32
    scf.if %2 {
      %cst_10 = arith.constant 0.000000e+00 : f32
      %12 = vector.broadcast %cst_10 : f32 to vector<16x32xf32>
      %c0_11 = arith.constant 0 : index
      %c0_12 = arith.constant 0 : index
      %13 = vector.load %arg9[%c0_11, %c0_12] : memref<16x32xf32, #tpu.memory_space<vmem>>, vector<16x32xf32>
      tpu.vector_store %arg9[%c0_11, %c0_12], %12 {strides = array<i32>} : memref<16x32xf32, #tpu.memory_space<vmem>>, vector<16x32xf32>,
    } else {
    }
    %c0 = arith.constant 0 : index
    %c0_1 = arith.constant 0 : index
    %3 = vector.load %arg9[%c0, %c0_1] : memref<16x32xf32, #tpu.memory_space<vmem>>, vector<16x32xf32>
    %c0_2 = arith.constant 0 : index
    %c0_3 = arith.constant 0 : index
    %4 = vector.load %arg2[%c0_2, %c0_3] : memref<16x32xbf16, #tpu.memory_space<vmem>>, vector<16x32xbf16>
    %c0_4 = arith.constant 0 : index
    %c0_5 = arith.constant 0 : index
    %5 = vector.load %arg3[%c0_4, %c0_5] : memref<32x32xbf16, #tpu.memory_space<vmem>>, vector<32x32xbf16>
    %cst = arith.constant dense<0.000000e+00> : vector<16x32xf32>
    %6 = tpu.matmul %4, %5, %cst {dimension_numbers = #tpu.dot_dimension_numbers<[1], [0], [0], [1], [0, 0, 1, 1], [], []>} : vector<16x32xbf16>, vector<32x32xbf16>, vector<16x32xf32> -> vector<16x32xf32>
    %7 = arith.addf %3, %6 : vector<16x32xf32>
    %c0_6 = arith.constant 0 : index
    %c0_7 = arith.constant 0 : index
    %8 = vector.load %arg9[%c0_6, %c0_7] : memref<16x32xf32, #tpu.memory_space<vmem>>, vector<16x32xf32>
    tpu.vector_store %arg9[%c0_6, %c0_7], %7 {strides = array<i32>} : memref<16x32xf32, #tpu.memory_space<vmem>>, vector<16x32xf32>,
    %c0_i32_8 = arith.constant 0 : i32
    %9 = arith.cmpi eq, %arg1, %c0_i32_8 : i32
    %10 = arith.extui %9 : i1 to i32
    %c0_i32_9 = arith.constant 0 : i32
    %11 = arith.cmpi ne, %10, %c0_i32_9 : i32
    scf.if %11 {
      %c0_10 = arith.constant 0 : index
      %c0_11 = arith.constant 0 : index
      %12 = vector.load %arg9[%c0_10, %c0_11] : memref<16x32xf32, #tpu.memory_space<vmem>>, vector<16x32xf32>
      %c0_12 = arith.constant 0 : index
      %c0_13 = arith.constant 0 : index
      %13 = vector.load %arg4[%c0_12, %c0_13] : memref<1x32xf32, #tpu.memory_space<vmem>>, vector<1x32xf32>
      %14 = vector.broadcast %13 : vector<1x32xf32> to vector<16x32xf32>
      %15 = arith.addf %12, %14 : vector<16x32xf32>
      %c0_14 = arith.constant 0 : index
      %c0_15 = arith.constant 0 : index
      %16 = vector.load %arg5[%c0_14, %c0_15] : memref<16x32xbf16, #tpu.memory_space<vmem>>, vector<16x32xbf16>
      %17 = arith.extf %16 : vector<16x32xbf16> to vector<16x32xf32>
      %18 = arith.addf %15, %17 : vector<16x32xf32>
      %cst_16 = arith.constant dense<0.000000e+00> : vector<16xf32>
      %19 = vector.multi_reduction <add>, %18, %cst_16 [1] : vector<16x32xf32> to vector<16xf32>
      %20 = vector.shape_cast %19 : vector<16xf32> to vector<16x1xf32>
      %cst_17 = arith.constant 3.200000e+01 : f32
      %21 = vector.broadcast %cst_17 : f32 to vector<16x1xf32>
      %22 = arith.divf %20, %21 : vector<16x1xf32>
      %23 = vector.broadcast %22 : vector<16x1xf32> to vector<16x32xf32>
      %24 = arith.subf %18, %23 : vector<16x32xf32>
      %25 = arith.mulf %24, %24 : vector<16x32xf32>
      %cst_18 = arith.constant dense<0.000000e+00> : vector<16xf32>
      %26 = vector.multi_reduction <add>, %25, %cst_18 [1] : vector<16x32xf32> to vector<16xf32>
      %27 = vector.shape_cast %26 : vector<16xf32> to vector<16x1xf32>
      %cst_19 = arith.constant 3.200000e+01 : f32
      %28 = vector.broadcast %cst_19 : f32 to vector<16x1xf32>
      %29 = arith.divf %27, %28 : vector<16x1xf32>
      %30 = vector.broadcast %22 : vector<16x1xf32> to vector<16x32xf32>
      %31 = arith.subf %18, %30 : vector<16x32xf32>
      %cst_20 = arith.constant 9.99999996E-13 : f32
      %32 = vector.broadcast %cst_20 : f32 to vector<16x1xf32>
      %33 = arith.addf %29, %32 : vector<16x1xf32>
      %34 = math.rsqrt %33 : vector<16x1xf32>
      %35 = vector.broadcast %34 : vector<16x1xf32> to vector<16x32xf32>
      %36 = arith.mulf %31, %35 : vector<16x32xf32>
      %c0_21 = arith.constant 0 : index
      %c0_22 = arith.constant 0 : index
      %37 = vector.load %arg6[%c0_21, %c0_22] : memref<1x32xf32, #tpu.memory_space<vmem>>, vector<1x32xf32>
      %38 = vector.broadcast %37 : vector<1x32xf32> to vector<16x32xf32>
      %39 = arith.mulf %36, %38 : vector<16x32xf32>
      %c0_23 = arith.constant 0 : index
      %c0_24 = arith.constant 0 : index
      %40 = vector.load %arg7[%c0_23, %c0_24] : memref<1x32xf32, #tpu.memory_space<vmem>>, vector<1x32xf32>
      %41 = vector.broadcast %40 : vector<1x32xf32> to vector<16x32xf32>
      %42 = arith.addf %39, %41 : vector<16x32xf32>
      %43 = arith.truncf %42 : vector<16x32xf32> to vector<16x32xbf16>
      %c0_25 = arith.constant 0 : index
      %c0_26 = arith.constant 0 : index
      %44 = vector.load %arg8[%c0_25, %c0_26] : memref<16x32xbf16, #tpu.memory_space<vmem>>, vector<16x32xbf16>
      tpu.vector_store %arg8[%c0_25, %c0_26], %43 {strides = array<i32>} : memref<16x32xbf16, #tpu.memory_space<vmem>>, vector<16x32xbf16>,
    } else {
    }
    return
  }
  func.func @transform_0(%arg0: i32, %arg1: i32) -> (i32, i32) {
    %c0_i32 = arith.constant 0 : i32
    return %arg0, %arg1 : i32, i32
  }
  func.func @transform_1(%arg0: i32, %arg1: i32) -> (i32, i32) {
    %c0_i32 = arith.constant 0 : i32
    %c0_i32_0 = arith.constant 0 : i32
    return %arg1, %c0_i32 : i32, i32
  }
  func.func @transform_2(%arg0: i32, %arg1: i32) -> (i32, i32) {
    %c0_i32 = arith.constant 0 : i32
    %c0_i32_0 = arith.constant 0 : i32
    %c0_i32_1 = arith.constant 0 : i32
    return %c0_i32, %c0_i32_0 : i32, i32
  }
  func.func @transform_3(%arg0: i32, %arg1: i32) -> (i32, i32) {
    %c0_i32 = arith.constant 0 : i32
    %c0_i32_0 = arith.constant 0 : i32
    return %arg0, %c0_i32 : i32, i32
  }
  func.func @transform_4(%arg0: i32, %arg1: i32) -> (i32, i32) {
    %c0_i32 = arith.constant 0 : i32
    %c0_i32_0 = arith.constant 0 : i32
    %c0_i32_1 = arith.constant 0 : i32
    return %c0_i32, %c0_i32_0 : i32, i32
  }
  func.func @transform_5(%arg0: i32, %arg1: i32) -> (i32, i32) {
    %c0_i32 = arith.constant 0 : i32
    %c0_i32_0 = arith.constant 0 : i32
    %c0_i32_1 = arith.constant 0 : i32
    return %c0_i32, %c0_i32_0 : i32, i32
  }
  func.func @transform_6(%arg0: i32, %arg1: i32) -> (i32, i32) {
    %c0_i32 = arith.constant 0 : i32
    %c0_i32_0 = arith.constant 0 : i32
    return %arg0, %c0_i32 : i32, i32
  }
}

module attributes {stable_mosaic.version = 11 : i64} {
  func.func @_matmul_bias_act_kernel(%arg0: i32, %arg1: i32, %arg2: i32, %arg3: memref<16x32xbf16, #tpu.memory_space<vmem>>, %arg4: memref<32x64xbf16, #tpu.memory_space<vmem>>, %arg5: memref<1x64xf32, #tpu.memory_space<vmem>>, %arg6: memref<16x64xbf16, #tpu.memory_space<vmem>>, %arg7: memref<16x64xf32, #tpu.memory_space<vmem>>) attributes {dimension_semantics = [#tpu.dimension_semantics<parallel>, #tpu.dimension_semantics<parallel>, #tpu.dimension_semantics<arbitrary>], iteration_bounds = array<i64: 1, 1, 1>, scalar_prefetch = 0 : i64, scratch_operands = 1 : i64, tpu.core_type = #tpu.core_type<tc>, window_params = [{transform_indices = @transform_0, window_bounds = array<i64: 16, 32>}, {transform_indices = @transform_1, window_bounds = array<i64: 32, 64>}, {transform_indices = @transform_2, window_bounds = array<i64: 1, 64>}, {transform_indices = @transform_3, window_bounds = array<i64: 16, 64>}]} {
    %c0_i32 = arith.constant 0 : i32
    %0 = arith.cmpi eq, %arg2, %c0_i32 : i32
    %1 = arith.extui %0 : i1 to i32
    %c0_i32_0 = arith.constant 0 : i32
    %2 = arith.cmpi ne, %1, %c0_i32_0 : i32
    scf.if %2 {
      %cst_10 = arith.constant 0.000000e+00 : f32
      %12 = vector.broadcast %cst_10 : f32 to vector<16x64xf32>
      %c0_11 = arith.constant 0 : index
      %c0_12 = arith.constant 0 : index
      %13 = vector.load %arg7[%c0_11, %c0_12] : memref<16x64xf32, #tpu.memory_space<vmem>>, vector<16x64xf32>
      tpu.vector_store %arg7[%c0_11, %c0_12], %12 {strides = array<i32>} : memref<16x64xf32, #tpu.memory_space<vmem>>, vector<16x64xf32>,
    } else {
    }
    %c0 = arith.constant 0 : index
    %c0_1 = arith.constant 0 : index
    %3 = vector.load %arg7[%c0, %c0_1] : memref<16x64xf32, #tpu.memory_space<vmem>>, vector<16x64xf32>
    %c0_2 = arith.constant 0 : index
    %c0_3 = arith.constant 0 : index
    %4 = vector.load %arg3[%c0_2, %c0_3] : memref<16x32xbf16, #tpu.memory_space<vmem>>, vector<16x32xbf16>
    %c0_4 = arith.constant 0 : index
    %c0_5 = arith.constant 0 : index
    %5 = vector.load %arg4[%c0_4, %c0_5] : memref<32x64xbf16, #tpu.memory_space<vmem>>, vector<32x64xbf16>
    %cst = arith.constant dense<0.000000e+00> : vector<16x64xf32>
    %6 = tpu.matmul %4, %5, %cst {dimension_numbers = #tpu.dot_dimension_numbers<[1], [0], [0], [1], [0, 0, 1, 1], [], []>} : vector<16x32xbf16>, vector<32x64xbf16>, vector<16x64xf32> -> vector<16x64xf32>
    %7 = arith.addf %3, %6 : vector<16x64xf32>
    %c0_6 = arith.constant 0 : index
    %c0_7 = arith.constant 0 : index
    %8 = vector.load %arg7[%c0_6, %c0_7] : memref<16x64xf32, #tpu.memory_space<vmem>>, vector<16x64xf32>
    tpu.vector_store %arg7[%c0_6, %c0_7], %7 {strides = array<i32>} : memref<16x64xf32, #tpu.memory_space<vmem>>, vector<16x64xf32>,
    %c0_i32_8 = arith.constant 0 : i32
    %9 = arith.cmpi eq, %arg2, %c0_i32_8 : i32
    %10 = arith.extui %9 : i1 to i32
    %c0_i32_9 = arith.constant 0 : i32
    %11 = arith.cmpi ne, %10, %c0_i32_9 : i32
    scf.if %11 {
      %c0_10 = arith.constant 0 : index
      %c0_11 = arith.constant 0 : index
      %12 = vector.load %arg7[%c0_10, %c0_11] : memref<16x64xf32, #tpu.memory_space<vmem>>, vector<16x64xf32>
      %c0_12 = arith.constant 0 : index
      %c0_13 = arith.constant 0 : index
      %13 = vector.load %arg5[%c0_12, %c0_13] : memref<1x64xf32, #tpu.memory_space<vmem>>, vector<1x64xf32>
      %14 = vector.broadcast %13 : vector<1x64xf32> to vector<16x64xf32>
      %15 = arith.addf %12, %14 : vector<16x64xf32>
      %cst_14 = arith.constant 5.000000e-01 : f32
      %16 = vector.broadcast %cst_14 : f32 to vector<16x64xf32>
      %17 = arith.mulf %16, %15 : vector<16x64xf32>
      %cst_15 = arith.constant 0.707106769 : f32
      %18 = vector.broadcast %cst_15 : f32 to vector<16x64xf32>
      %19 = arith.mulf %15, %18 : vector<16x64xf32>
      %20 = math.erf %19 : vector<16x64xf32>
      %cst_16 = arith.constant 1.000000e+00 : f32
      %21 = vector.broadcast %cst_16 : f32 to vector<16x64xf32>
      %22 = arith.addf %21, %20 : vector<16x64xf32>
      %23 = arith.mulf %17, %22 : vector<16x64xf32>
      %24 = arith.truncf %23 : vector<16x64xf32> to vector<16x64xbf16>
      %c0_17 = arith.constant 0 : index
      %c0_18 = arith.constant 0 : index
      %25 = vector.load %arg6[%c0_17, %c0_18] : memref<16x64xbf16, #tpu.memory_space<vmem>>, vector<16x64xbf16>
      tpu.vector_store %arg6[%c0_17, %c0_18], %24 {strides = array<i32>} : memref<16x64xbf16, #tpu.memory_space<vmem>>, vector<16x64xbf16>,
    } else {
    }
    return
  }
  func.func @transform_0(%arg0: i32, %arg1: i32, %arg2: i32) -> (i32, i32) {
    %c0_i32 = arith.constant 0 : i32
    return %arg0, %arg2 : i32, i32
  }
  func.func @transform_1(%arg0: i32, %arg1: i32, %arg2: i32) -> (i32, i32) {
    %c0_i32 = arith.constant 0 : i32
    return %arg2, %arg1 : i32, i32
  }
  func.func @transform_2(%arg0: i32, %arg1: i32, %arg2: i32) -> (i32, i32) {
    %c0_i32 = arith.constant 0 : i32
    %c0_i32_0 = arith.constant 0 : i32
    return %c0_i32, %arg1 : i32, i32
  }
  func.func @transform_3(%arg0: i32, %arg1: i32, %arg2: i32) -> (i32, i32) {
    %c0_i32 = arith.constant 0 : i32
    return %arg0, %arg1 : i32, i32
  }
}

module attributes {stable_mosaic.version = 11 : i64} {
  func.func @_matmul_res_ln_kernel(%arg0: i32, %arg1: i32, %arg2: memref<16x64xbf16, #tpu.memory_space<vmem>>, %arg3: memref<64x32xbf16, #tpu.memory_space<vmem>>, %arg4: memref<1x32xf32, #tpu.memory_space<vmem>>, %arg5: memref<16x32xbf16, #tpu.memory_space<vmem>>, %arg6: memref<1x32xf32, #tpu.memory_space<vmem>>, %arg7: memref<1x32xf32, #tpu.memory_space<vmem>>, %arg8: memref<16x32xbf16, #tpu.memory_space<vmem>>, %arg9: memref<16x32xf32, #tpu.memory_space<vmem>>) attributes {dimension_semantics = [#tpu.dimension_semantics<parallel>, #tpu.dimension_semantics<arbitrary>], iteration_bounds = array<i64: 1, 1>, scalar_prefetch = 0 : i64, scratch_operands = 1 : i64, tpu.core_type = #tpu.core_type<tc>, window_params = [{transform_indices = @transform_0, window_bounds = array<i64: 16, 64>}, {transform_indices = @transform_1, window_bounds = array<i64: 64, 32>}, {pipeline_mode = #tpu.pipeline_mode<synchronous>, transform_indices = @transform_2, window_bounds = array<i64: 1, 32>}, {transform_indices = @transform_3, window_bounds = array<i64: 16, 32>}, {pipeline_mode = #tpu.pipeline_mode<synchronous>, transform_indices = @transform_4, window_bounds = array<i64: 1, 32>}, {pipeline_mode = #tpu.pipeline_mode<synchronous>, transform_indices = @transform_5, window_bounds = array<i64: 1, 32>}, {transform_indices = @transform_6, window_bounds = array<i64: 16, 32>}]} {
    %c0_i32 = arith.constant 0 : i32
    %0 = arith.cmpi eq, %arg1, %c0_i32 : i32
    %1 = arith.extui %0 : i1 to i32
    %c0_i32_0 = arith.constant 0 : i32
    %2 = arith.cmpi ne, %1, %c0_i32_0 : i32
    scf.if %2 {
      %cst_10 = arith.constant 0.000000e+00 : f32
      %12 = vector.broadcast %cst_10 : f32 to vector<16x32xf32>
      %c0_11 = arith.constant 0 : index
      %c0_12 = arith.constant 0 : index
      %13 = vector.load %arg9[%c0_11, %c0_12] : memref<16x32xf32, #tpu.memory_space<vmem>>, vector<16x32xf32>
      tpu.vector_store %arg9[%c0_11, %c0_12], %12 {strides = array<i32>} : memref<16x32xf32, #tpu.memory_space<vmem>>, vector<16x32xf32>,
    } else {
    }
    %c0 = arith.constant 0 : index
    %c0_1 = arith.constant 0 : index
    %3 = vector.load %arg9[%c0, %c0_1] : memref<16x32xf32, #tpu.memory_space<vmem>>, vector<16x32xf32>
    %c0_2 = arith.constant 0 : index
    %c0_3 = arith.constant 0 : index
    %4 = vector.load %arg2[%c0_2, %c0_3] : memref<16x64xbf16, #tpu.memory_space<vmem>>, vector<16x64xbf16>
    %c0_4 = arith.constant 0 : index
    %c0_5 = arith.constant 0 : index
    %5 = vector.load %arg3[%c0_4, %c0_5] : memref<64x32xbf16, #tpu.memory_space<vmem>>, vector<64x32xbf16>
    %cst = arith.constant dense<0.000000e+00> : vector<16x32xf32>
    %6 = tpu.matmul %4, %5, %cst {dimension_numbers = #tpu.dot_dimension_numbers<[1], [0], [0], [1], [0, 0, 1, 1], [], []>} : vector<16x64xbf16>, vector<64x32xbf16>, vector<16x32xf32> -> vector<16x32xf32>
    %7 = arith.addf %3, %6 : vector<16x32xf32>
    %c0_6 = arith.constant 0 : index
    %c0_7 = arith.constant 0 : index
    %8 = vector.load %arg9[%c0_6, %c0_7] : memref<16x32xf32, #tpu.memory_space<vmem>>, vector<16x32xf32>
    tpu.vector_store %arg9[%c0_6, %c0_7], %7 {strides = array<i32>} : memref<16x32xf32, #tpu.memory_space<vmem>>, vector<16x32xf32>,
    %c0_i32_8 = arith.constant 0 : i32
    %9 = arith.cmpi eq, %arg1, %c0_i32_8 : i32
    %10 = arith.extui %9 : i1 to i32
    %c0_i32_9 = arith.constant 0 : i32
    %11 = arith.cmpi ne, %10, %c0_i32_9 : i32
    scf.if %11 {
      %c0_10 = arith.constant 0 : index
      %c0_11 = arith.constant 0 : index
      %12 = vector.load %arg9[%c0_10, %c0_11] : memref<16x32xf32, #tpu.memory_space<vmem>>, vector<16x32xf32>
      %c0_12 = arith.constant 0 : index
      %c0_13 = arith.constant 0 : index
      %13 = vector.load %arg4[%c0_12, %c0_13] : memref<1x32xf32, #tpu.memory_space<vmem>>, vector<1x32xf32>
      %14 = vector.broadcast %13 : vector<1x32xf32> to vector<16x32xf32>
      %15 = arith.addf %12, %14 : vector<16x32xf32>
      %c0_14 = arith.constant 0 : index
      %c0_15 = arith.constant 0 : index
      %16 = vector.load %arg5[%c0_14, %c0_15] : memref<16x32xbf16, #tpu.memory_space<vmem>>, vector<16x32xbf16>
      %17 = arith.extf %16 : vector<16x32xbf16> to vector<16x32xf32>
      %18 = arith.addf %15, %17 : vector<16x32xf32>
      %cst_16 = arith.constant dense<0.000000e+00> : vector<16xf32>
      %19 = vector.multi_reduction <add>, %18, %cst_16 [1] : vector<16x32xf32> to vector<16xf32>
      %20 = vector.shape_cast %19 : vector<16xf32> to vector<16x1xf32>
      %cst_17 = arith.constant 3.200000e+01 : f32
      %21 = vector.broadcast %cst_17 : f32 to vector<16x1xf32>
      %22 = arith.divf %20, %21 : vector<16x1xf32>
      %23 = vector.broadcast %22 : vector<16x1xf32> to vector<16x32xf32>
      %24 = arith.subf %18, %23 : vector<16x32xf32>
      %25 = arith.mulf %24, %24 : vector<16x32xf32>
      %cst_18 = arith.constant dense<0.000000e+00> : vector<16xf32>
      %26 = vector.multi_reduction <add>, %25, %cst_18 [1] : vector<16x32xf32> to vector<16xf32>
      %27 = vector.shape_cast %26 : vector<16xf32> to vector<16x1xf32>
      %cst_19 = arith.constant 3.200000e+01 : f32
      %28 = vector.broadcast %cst_19 : f32 to vector<16x1xf32>
      %29 = arith.divf %27, %28 : vector<16x1xf32>
      %30 = vector.broadcast %22 : vector<16x1xf32> to vector<16x32xf32>
      %31 = arith.subf %18, %30 : vector<16x32xf32>
      %cst_20 = arith.constant 9.99999996E-13 : f32
      %32 = vector.broadcast %cst_20 : f32 to vector<16x1xf32>
      %33 = arith.addf %29, %32 : vector<16x1xf32>
      %34 = math.rsqrt %33 : vector<16x1xf32>
      %35 = vector.broadcast %34 : vector<16x1xf32> to vector<16x32xf32>
      %36 = arith.mulf %31, %35 : vector<16x32xf32>
      %c0_21 = arith.constant 0 : index
      %c0_22 = arith.constant 0 : index
      %37 = vector.load %arg6[%c0_21, %c0_22] : memref<1x32xf32, #tpu.memory_space<vmem>>, vector<1x32xf32>
      %38 = vector.broadcast %37 : vector<1x32xf32> to vector<16x32xf32>
      %39 = arith.mulf %36, %38 : vector<16x32xf32>
      %c0_23 = arith.constant 0 : index
      %c0_24 = arith.constant 0 : index
      %40 = vector.load %arg7[%c0_23, %c0_24] : memref<1x32xf32, #tpu.memory_space<vmem>>, vector<1x32xf32>
      %41 = vector.broadcast %40 : vector<1x32xf32> to vector<16x32xf32>
      %42 = arith.addf %39, %41 : vector<16x32xf32>
      %43 = arith.truncf %42 : vector<16x32xf32> to vector<16x32xbf16>
      %c0_25 = arith.constant 0 : index
      %c0_26 = arith.constant 0 : index
      %44 = vector.load %arg8[%c0_25, %c0_26] : memref<16x32xbf16, #tpu.memory_space<vmem>>, vector<16x32xbf16>
      tpu.vector_store %arg8[%c0_25, %c0_26], %43 {strides = array<i32>} : memref<16x32xbf16, #tpu.memory_space<vmem>>, vector<16x32xbf16>,
    } else {
    }
    return
  }
  func.func @transform_0(%arg0: i32, %arg1: i32) -> (i32, i32) {
    %c0_i32 = arith.constant 0 : i32
    return %arg0, %arg1 : i32, i32
  }
  func.func @transform_1(%arg0: i32, %arg1: i32) -> (i32, i32) {
    %c0_i32 = arith.constant 0 : i32
    %c0_i32_0 = arith.constant 0 : i32
    return %arg1, %c0_i32 : i32, i32
  }
  func.func @transform_2(%arg0: i32, %arg1: i32) -> (i32, i32) {
    %c0_i32 = arith.constant 0 : i32
    %c0_i32_0 = arith.constant 0 : i32
    %c0_i32_1 = arith.constant 0 : i32
    return %c0_i32, %c0_i32_0 : i32, i32
  }
  func.func @transform_3(%arg0: i32, %arg1: i32) -> (i32, i32) {
    %c0_i32 = arith.constant 0 : i32
    %c0_i32_0 = arith.constant 0 : i32
    return %arg0, %c0_i32 : i32, i32
  }
  func.func @transform_4(%arg0: i32, %arg1: i32) -> (i32, i32) {
    %c0_i32 = arith.constant 0 : i32
    %c0_i32_0 = arith.constant 0 : i32
    %c0_i32_1 = arith.constant 0 : i32
    return %c0_i32, %c0_i32_0 : i32, i32
  }
  func.func @transform_5(%arg0: i32, %arg1: i32) -> (i32, i32) {
    %c0_i32 = arith.constant 0 : i32
    %c0_i32_0 = arith.constant 0 : i32
    %c0_i32_1 = arith.constant 0 : i32
    return %c0_i32, %c0_i32_0 : i32, i32
  }
  func.func @transform_6(%arg0: i32, %arg1: i32) -> (i32, i32) {
    %c0_i32 = arith.constant 0 : i32
    %c0_i32_0 = arith.constant 0 : i32
    return %arg0, %c0_i32 : i32, i32
  }
}

module attributes {stable_mosaic.version = 11 : i64} {
  func.func @_matmul_bias_act_kernel(%arg0: i32, %arg1: i32, %arg2: i32, %arg3: memref<2x32xbf16, #tpu.memory_space<vmem>>, %arg4: memref<32x16xbf16, #tpu.memory_space<vmem>>, %arg5: memref<1x16xf32, #tpu.memory_space<vmem>>, %arg6: memref<2x16xf32, #tpu.memory_space<vmem>>, %arg7: memref<2x16xf32, #tpu.memory_space<vmem>>) attributes {dimension_semantics = [#tpu.dimension_semantics<parallel>, #tpu.dimension_semantics<parallel>, #tpu.dimension_semantics<arbitrary>], iteration_bounds = array<i64: 1, 1, 1>, scalar_prefetch = 0 : i64, scratch_operands = 1 : i64, tpu.core_type = #tpu.core_type<tc>, window_params = [{transform_indices = @transform_0, window_bounds = array<i64: 2, 32>}, {transform_indices = @transform_1, window_bounds = array<i64: 32, 16>}, {transform_indices = @transform_2, window_bounds = array<i64: 1, 16>}, {transform_indices = @transform_3, window_bounds = array<i64: 2, 16>}]} {
    %c0_i32 = arith.constant 0 : i32
    %0 = arith.cmpi eq, %arg2, %c0_i32 : i32
    %1 = arith.extui %0 : i1 to i32
    %c0_i32_0 = arith.constant 0 : i32
    %2 = arith.cmpi ne, %1, %c0_i32_0 : i32
    scf.if %2 {
      %cst_10 = arith.constant 0.000000e+00 : f32
      %12 = vector.broadcast %cst_10 : f32 to vector<2x16xf32>
      %c0_11 = arith.constant 0 : index
      %c0_12 = arith.constant 0 : index
      %13 = vector.load %arg7[%c0_11, %c0_12] : memref<2x16xf32, #tpu.memory_space<vmem>>, vector<2x16xf32>
      tpu.vector_store %arg7[%c0_11, %c0_12], %12 {strides = array<i32>} : memref<2x16xf32, #tpu.memory_space<vmem>>, vector<2x16xf32>,
    } else {
    }
    %c0 = arith.constant 0 : index
    %c0_1 = arith.constant 0 : index
    %3 = vector.load %arg7[%c0, %c0_1] : memref<2x16xf32, #tpu.memory_space<vmem>>, vector<2x16xf32>
    %c0_2 = arith.constant 0 : index
    %c0_3 = arith.constant 0 : index
    %4 = vector.load %arg3[%c0_2, %c0_3] : memref<2x32xbf16, #tpu.memory_space<vmem>>, vector<2x32xbf16>
    %c0_4 = arith.constant 0 : index
    %c0_5 = arith.constant 0 : index
    %5 = vector.load %arg4[%c0_4, %c0_5] : memref<32x16xbf16, #tpu.memory_space<vmem>>, vector<32x16xbf16>
    %cst = arith.constant dense<0.000000e+00> : vector<2x16xf32>
    %6 = tpu.matmul %4, %5, %cst {dimension_numbers = #tpu.dot_dimension_numbers<[1], [0], [0], [1], [0, 0, 1, 1], [], []>} : vector<2x32xbf16>, vector<32x16xbf16>, vector<2x16xf32> -> vector<2x16xf32>
    %7 = arith.addf %3, %6 : vector<2x16xf32>
    %c0_6 = arith.constant 0 : index
    %c0_7 = arith.constant 0 : index
    %8 = vector.load %arg7[%c0_6, %c0_7] : memref<2x16xf32, #tpu.memory_space<vmem>>, vector<2x16xf32>
    tpu.vector_store %arg7[%c0_6, %c0_7], %7 {strides = array<i32>} : memref<2x16xf32, #tpu.memory_space<vmem>>, vector<2x16xf32>,
    %c0_i32_8 = arith.constant 0 : i32
    %9 = arith.cmpi eq, %arg2, %c0_i32_8 : i32
    %10 = arith.extui %9 : i1 to i32
    %c0_i32_9 = arith.constant 0 : i32
    %11 = arith.cmpi ne, %10, %c0_i32_9 : i32
    scf.if %11 {
      %c0_10 = arith.constant 0 : index
      %c0_11 = arith.constant 0 : index
      %12 = vector.load %arg7[%c0_10, %c0_11] : memref<2x16xf32, #tpu.memory_space<vmem>>, vector<2x16xf32>
      %c0_12 = arith.constant 0 : index
      %c0_13 = arith.constant 0 : index
      %13 = vector.load %arg5[%c0_12, %c0_13] : memref<1x16xf32, #tpu.memory_space<vmem>>, vector<1x16xf32>
      %14 = vector.broadcast %13 : vector<1x16xf32> to vector<2x16xf32>
      %15 = arith.addf %12, %14 : vector<2x16xf32>
      %c0_14 = arith.constant 0 : index
      %c0_15 = arith.constant 0 : index
      %16 = vector.load %arg6[%c0_14, %c0_15] : memref<2x16xf32, #tpu.memory_space<vmem>>, vector<2x16xf32>
      tpu.vector_store %arg6[%c0_14, %c0_15], %15 {strides = array<i32>} : memref<2x16xf32, #tpu.memory_space<vmem>>, vector<2x16xf32>,
    } else {
    }
    return
  }
  func.func @transform_0(%arg0: i32, %arg1: i32, %arg2: i32) -> (i32, i32) {
    %c0_i32 = arith.constant 0 : i32
    return %arg0, %arg2 : i32, i32
  }
  func.func @transform_1(%arg0: i32, %arg1: i32, %arg2: i32) -> (i32, i32) {
    %c0_i32 = arith.constant 0 : i32
    return %arg2, %arg1 : i32, i32
  }
  func.func @transform_2(%arg0: i32, %arg1: i32, %arg2: i32) -> (i32, i32) {
    %c0_i32 = arith.constant 0 : i32
    %c0_i32_0 = arith.constant 0 : i32
    return %c0_i32, %arg1 : i32, i32
  }
  func.func @transform_3(%arg0: i32, %arg1: i32, %arg2: i32) -> (i32, i32) {
    %c0_i32 = arith.constant 0 : i32
    return %arg0, %arg1 : i32, i32
  }
}

module attributes {stable_mosaic.version = 11 : i64} {
  func.func @_matmul_bias_act_kernel(%arg0: i32, %arg1: i32, %arg2: i32, %arg3: memref<2x32xbf16, #tpu.memory_space<vmem>>, %arg4: memref<32x32xbf16, #tpu.memory_space<vmem>>, %arg5: memref<1x32xf32, #tpu.memory_space<vmem>>, %arg6: memref<2x32xbf16, #tpu.memory_space<vmem>>, %arg7: memref<2x32xf32, #tpu.memory_space<vmem>>) attributes {dimension_semantics = [#tpu.dimension_semantics<parallel>, #tpu.dimension_semantics<parallel>, #tpu.dimension_semantics<arbitrary>], iteration_bounds = array<i64: 1, 1, 1>, scalar_prefetch = 0 : i64, scratch_operands = 1 : i64, tpu.core_type = #tpu.core_type<tc>, window_params = [{transform_indices = @transform_0, window_bounds = array<i64: 2, 32>}, {transform_indices = @transform_1, window_bounds = array<i64: 32, 32>}, {transform_indices = @transform_2, window_bounds = array<i64: 1, 32>}, {transform_indices = @transform_3, window_bounds = array<i64: 2, 32>}]} {
    %c0_i32 = arith.constant 0 : i32
    %0 = arith.cmpi eq, %arg2, %c0_i32 : i32
    %1 = arith.extui %0 : i1 to i32
    %c0_i32_0 = arith.constant 0 : i32
    %2 = arith.cmpi ne, %1, %c0_i32_0 : i32
    scf.if %2 {
      %cst_10 = arith.constant 0.000000e+00 : f32
      %12 = vector.broadcast %cst_10 : f32 to vector<2x32xf32>
      %c0_11 = arith.constant 0 : index
      %c0_12 = arith.constant 0 : index
      %13 = vector.load %arg7[%c0_11, %c0_12] : memref<2x32xf32, #tpu.memory_space<vmem>>, vector<2x32xf32>
      tpu.vector_store %arg7[%c0_11, %c0_12], %12 {strides = array<i32>} : memref<2x32xf32, #tpu.memory_space<vmem>>, vector<2x32xf32>,
    } else {
    }
    %c0 = arith.constant 0 : index
    %c0_1 = arith.constant 0 : index
    %3 = vector.load %arg7[%c0, %c0_1] : memref<2x32xf32, #tpu.memory_space<vmem>>, vector<2x32xf32>
    %c0_2 = arith.constant 0 : index
    %c0_3 = arith.constant 0 : index
    %4 = vector.load %arg3[%c0_2, %c0_3] : memref<2x32xbf16, #tpu.memory_space<vmem>>, vector<2x32xbf16>
    %c0_4 = arith.constant 0 : index
    %c0_5 = arith.constant 0 : index
    %5 = vector.load %arg4[%c0_4, %c0_5] : memref<32x32xbf16, #tpu.memory_space<vmem>>, vector<32x32xbf16>
    %cst = arith.constant dense<0.000000e+00> : vector<2x32xf32>
    %6 = tpu.matmul %4, %5, %cst {dimension_numbers = #tpu.dot_dimension_numbers<[1], [0], [0], [1], [0, 0, 1, 1], [], []>} : vector<2x32xbf16>, vector<32x32xbf16>, vector<2x32xf32> -> vector<2x32xf32>
    %7 = arith.addf %3, %6 : vector<2x32xf32>
    %c0_6 = arith.constant 0 : index
    %c0_7 = arith.constant 0 : index
    %8 = vector.load %arg7[%c0_6, %c0_7] : memref<2x32xf32, #tpu.memory_space<vmem>>, vector<2x32xf32>
    tpu.vector_store %arg7[%c0_6, %c0_7], %7 {strides = array<i32>} : memref<2x32xf32, #tpu.memory_space<vmem>>, vector<2x32xf32>,
    %c0_i32_8 = arith.constant 0 : i32
    %9 = arith.cmpi eq, %arg2, %c0_i32_8 : i32
    %10 = arith.extui %9 : i1 to i32
    %c0_i32_9 = arith.constant 0 : i32
    %11 = arith.cmpi ne, %10, %c0_i32_9 : i32
    scf.if %11 {
      %c0_10 = arith.constant 0 : index
      %c0_11 = arith.constant 0 : index
      %12 = vector.load %arg7[%c0_10, %c0_11] : memref<2x32xf32, #tpu.memory_space<vmem>>, vector<2x32xf32>
      %c0_12 = arith.constant 0 : index
      %c0_13 = arith.constant 0 : index
      %13 = vector.load %arg5[%c0_12, %c0_13] : memref<1x32xf32, #tpu.memory_space<vmem>>, vector<1x32xf32>
      %14 = vector.broadcast %13 : vector<1x32xf32> to vector<2x32xf32>
      %15 = arith.addf %12, %14 : vector<2x32xf32>
      %16 = math.tanh %15 : vector<2x32xf32>
      %17 = arith.truncf %16 : vector<2x32xf32> to vector<2x32xbf16>
      %c0_14 = arith.constant 0 : index
      %c0_15 = arith.constant 0 : index
      %18 = vector.load %arg6[%c0_14, %c0_15] : memref<2x32xbf16, #tpu.memory_space<vmem>>, vector<2x32xbf16>
      tpu.vector_store %arg6[%c0_14, %c0_15], %17 {strides = array<i32>} : memref<2x32xbf16, #tpu.memory_space<vmem>>, vector<2x32xbf16>,
    } else {
    }
    return
  }
  func.func @transform_0(%arg0: i32, %arg1: i32, %arg2: i32) -> (i32, i32) {
    %c0_i32 = arith.constant 0 : i32
    return %arg0, %arg2 : i32, i32
  }
  func.func @transform_1(%arg0: i32, %arg1: i32, %arg2: i32) -> (i32, i32) {
    %c0_i32 = arith.constant 0 : i32
    return %arg2, %arg1 : i32, i32
  }
  func.func @transform_2(%arg0: i32, %arg1: i32, %arg2: i32) -> (i32, i32) {
    %c0_i32 = arith.constant 0 : i32
    %c0_i32_0 = arith.constant 0 : i32
    return %c0_i32, %arg1 : i32, i32
  }
  func.func @transform_3(%arg0: i32, %arg1: i32, %arg2: i32) -> (i32, i32) {
    %c0_i32 = arith.constant 0 : i32
    return %arg0, %arg1 : i32, i32
  }
}

</mosaic_0001>

<llo_original>
// kernel: encoder_forward.15
$region0: #{encoder_forward.15}
  #allocation0 [shape = 'u32[]', space=smem, size = 0x4, offset = 0x4, fixed_abs, tag = 'smem constant byte address 0x4 - core index']
  #allocation1 [shape = 'u32[144,128]{1,0:T(1,128)}', space=vmem, size = 0x12000, scoped, tag = 'internal scratch']
  %s0 = inlined_call_operand.vmem [shape: bf16[2,8,96], index: 0, kind: input, shape index: {}]
  %s1 = inlined_call_operand.vmem [shape: f32[2,1,8], index: 1, kind: input, shape index: {}]
  %s2 = inlined_call_operand.vmem [shape: bf16[2,8,32], index: 2, kind: output, shape index: {}]
  %s3 = sld [smem:[#allocation0]]
  $region41: #{encoder_forward.15} parent=0
    _
  %s5 = ssub.s32 1, %s3
  %s6 = scalar_select 0, %s5, %s3
  loop: start=0, step=1, limit=4
  $region2: #{encoder_forward.15} parent=0 // loop_pre_header
    _
  $region3: #{encoder_forward.15} parent=0 // loop_header
    %s8 = sphi 0, %s12
    %p9 = scmp.ge.s32.totalorder %s8, 4
    %s18 = sphi 0, %s20
    %s21 = sphi 0, %s18
    %s22 = sphi 0, %s21
    %s38 = sphi 0, %s22
    %s44 = sphi 0, %s46
    %s47 = sphi 0, %s44
    %s48 = sphi 0, %s47
    %s64 = sphi 0, %s48
    %s70 = sphi 0, %s72
    %s73 = sphi 0, %s70
    %s74 = sphi 0, %s73
    %s90 = sphi 0, %s74
  $region4: #{encoder_forward.15} parent=0 // loop_header_branch
    %11 = sbr.rel (%p9) target = $region8
  $region5: #{encoder_forward.15} parent=0 // loop_body
    %s13 = ssub.s32 %s8, 1
    %s14 = ssub.s32 %s8, 2
    %s15 = sadd.s32 %s8, 1
    %s16 = ssub.s32 %s8, %s15
    %p17 = scmp.eq.s32.totalorder %s16, 0
    %s19 = sadd.s32 %s18, 1
    %s20 = scalar_select %p17, %s18, %s19
    %p23 = pneg %p17
    %p24 = scmp.eq.s32.totalorder %s8, 1
    %p25 = por %p23, %p24
    %p26 = scmp.ne.s32.totalorder %s18, %s21
    %p27 = scmp.eq.s32.totalorder %s8, 0
    %p28 = por %p26, %p27
    %p29 = scmp.ne.s32.totalorder %s18, %s21
    %p30 = scmp.eq.s32.totalorder %s13, 1
    %p31 = por %p29, %p30
    %p32 = scmp.ne.s32.totalorder %s21, %s22
    %p33 = scmp.eq.s32.totalorder %s13, 0
    %p34 = por %p32, %p33
    %p35 = scmp.ne.s32.totalorder %s21, %s22
    %p36 = scmp.eq.s32.totalorder %s14, 1
    %p37 = por %p35, %p36
    %p39 = scmp.ne.s32.totalorder %s22, %s38
    %p40 = scmp.eq.s32.totalorder %s14, 0
    %p41 = por %p39, %p40
    %s42 = ssub.s32 %s8, %s15
    %p43 = scmp.eq.s32.totalorder %s42, 0
    %s45 = sadd.s32 %s44, 1
    %s46 = scalar_select %p43, %s44, %s45
    %p49 = pneg %p43
    %p50 = scmp.eq.s32.totalorder %s8, 1
    %p51 = por %p49, %p50
    %p52 = scmp.ne.s32.totalorder %s44, %s47
    %p53 = scmp.eq.s32.totalorder %s8, 0
    %p54 = por %p52, %p53
    %p55 = scmp.ne.s32.totalorder %s44, %s47
    %p56 = scmp.eq.s32.totalorder %s13, 1
    %p57 = por %p55, %p56
    %p58 = scmp.ne.s32.totalorder %s47, %s48
    %p59 = scmp.eq.s32.totalorder %s13, 0
    %p60 = por %p58, %p59
    %p61 = scmp.ne.s32.totalorder %s47, %s48
    %p62 = scmp.eq.s32.totalorder %s14, 1
    %p63 = por %p61, %p62
    %p65 = scmp.ne.s32.totalorder %s48, %s64
    %p66 = scmp.eq.s32.totalorder %s14, 0
    %p67 = por %p65, %p66
    %s68 = ssub.s32 %s8, %s15
    %p69 = scmp.eq.s32.totalorder %s68, 0
    %s71 = sadd.s32 %s70, 1
    %s72 = scalar_select %p69, %s70, %s71
    %p75 = pneg %p69
    %p76 = scmp.eq.s32.totalorder %s8, 1
    %p77 = por %p75, %p76
    %p78 = scmp.ne.s32.totalorder %s70, %s73
    %p79 = scmp.eq.s32.totalorder %s8, 0
    %p80 = por %p78, %p79
    %p81 = scmp.ne.s32.totalorder %s70, %s73
    %p82 = scmp.eq.s32.totalorder %s13, 1
    %p83 = por %p81, %p82
    %p84 = scmp.ne.s32.totalorder %s73, %s74
    %p85 = scmp.eq.s32.totalorder %s13, 0
    %p86 = por %p84, %p85
    %p87 = scmp.ne.s32.totalorder %s73, %s74
    %p88 = scmp.eq.s32.totalorder %s14, 1
    %p89 = por %p87, %p88
    %p91 = scmp.ne.s32.totalorder %s74, %s90
    %p92 = scmp.eq.s32.totalorder %s14, 0
    %p93 = por %p91, %p92
    %p94 = scmp.le.s32.totalorder 1, %s8
    %p95 = scmp.lt.s32.totalorder %s8, 3
    %p96 = pnand %p94, %p95
    %p97 = pneg %p96
    // Predicated region
    $region9: #{encoder_forward.15} parent=5 // pred_check
      _
    $region10: #{encoder_forward.15} parent=5 // pred_check_branch
      %99 = sbr.rel (%p96) target = $region12
    $region11: #{encoder_forward.15} parent=5 // pred_region
      %s100 = ssub.s32 %s8, 1
    $region12: #{encoder_forward.15} parent=5 // pred_fallthru
      _
    %p101 = scmp.lt.s32.totalorder %s8, 2
    // Predicated region
    $region13: #{encoder_forward.15} parent=5 // pred_check
      %p102 = pneg %p101
    $region14: #{encoder_forward.15} parent=5 // pred_check_branch
      %104 = sbr.rel (%p102) target = $region16
    $region15: #{encoder_forward.15} parent=5 // pred_region
      // Predicated region
      $region17: #{encoder_forward.15} parent=15 // pred_check
        %p105 = pneg %p28
      $region18: #{encoder_forward.15} parent=15 // pred_check_branch
        %107 = sbr.rel (%p105) target = $region20
      $region19: #{encoder_forward.15} parent=15 // pred_region
        %p108 = scmp.lt.s32.totalorder %s8, 1
        %s109 = scalar_select %p108, %s8, 1
        %s110 = smul.addr %s109, 4
        %s111 = scalar_lea.vmem %s0, %s110
      $region20: #{encoder_forward.15} parent=15 // pred_fallthru
        _
      // Predicated region
      $region21: #{encoder_forward.15} parent=15 // pred_check
        %p112 = pneg %p54
      $region22: #{encoder_forward.15} parent=15 // pred_check_branch
        %114 = sbr.rel (%p112) target = $region24
      $region23: #{encoder_forward.15} parent=15 // pred_region
        %p115 = scmp.lt.s32.totalorder %s8, 1
        %s116 = scalar_select %p115, %s8, 1
        %s117 = scalar_lea.vmem %s1, %s116
      $region24: #{encoder_forward.15} parent=15 // pred_fallthru
        _
    $region16: #{encoder_forward.15} parent=5 // pred_fallthru
      _
    %p118 = scmp.le.s32.totalorder 1, %s8
    %p119 = scmp.lt.s32.totalorder %s8, 3
    %p120 = pnand %p118, %p119
    %p121 = pneg %p120
    // Predicated region
    $region25: #{encoder_forward.15} parent=5 // pred_check
      _
    $region26: #{encoder_forward.15} parent=5 // pred_check_branch
      %123 = sbr.rel (%p120) target = $region28
    $region27: #{encoder_forward.15} parent=5 // pred_region
      %s124 = ssub.s32 %s8, 1
      %p125 = scmp.lt.s32.totalorder %s13, 1
      %s126 = scalar_select %p125, %s13, 1
      %s127 = smul.addr %s126, 4
      %s128 = scalar_lea.vmem %s0, %s127
      %p129 = pneg %p34
      %p130 = pneg %p31
      %p131 = scmp.lt.s32.totalorder %s13, 1
      %s132 = scalar_select %p131, %s13, 1
      %s133 = scalar_lea.vmem %s1, %s132
      %p134 = pneg %p60
      %p135 = pneg %p57
      %p136 = pneg %p86
      %p137 = pneg %p83
      %p138 = scmp.lt.s32.totalorder %s13, 1
      %s139 = scalar_select %p138, %s13, 1
      %s140 = smul.addr %s139, 4
      %s141 = scalar_lea.vmem %s2, %s140
      %p142 = scmp.lt.s32.totalorder %s13, 1
      %s143 = scalar_select %p142, %s13, 1
      %s144 = smul.addr %s143, 4
      %s145 = scalar_lea.vmem %s0, %s144
      %p146 = scmp.lt.s32.totalorder %s13, 1
      %s147 = scalar_select %p146, %s13, 1
      %s148 = scalar_lea.vmem %s1, %s147
      %p149 = scmp.lt.s32.totalorder %s13, 1
      %s150 = scalar_select %p149, %s13, 1
      %s151 = smul.addr %s150, 4
      %s152 = scalar_lea.vmem %s2, %s151
      %v154 = vld [vmem:[%s145] sm:$0xf]
      %v155 = vld [vmem:[%s148] sm:$0x1]
      %v157 = vunpack.c.l.b16 %v154
      %v158 = vpack.c.b16 %v157, %v157
      %159 = vrot.lane.b32.xlu0 %v158, 96
      %v160 = vpop.permute.xlu0 %159
      %vm161 = vcmask 130048
      %v163 = vsel %vm161, %v154, 0
      %v166 = vsel %vm161, %v160, 0
      %168 = vmatprep.subr.bf16.mxu0 0
      %169 = vmatpush1.bf16.xpose.msra.mxu0 %v166
      %170 = vmatprep.subr.bf16.mxu0 0
      %171 = vmatpush1.bf16.xpose.msra.mxu0 0
      %172 = vmatprep.subr.bf16.mxu0 0
      %173 = vmatpush1.bf16.xpose.msra.mxu0 0
      %174 = vmatprep.subr.bf16.mxu0 0
      %175 = vmatpush1.bf16.xpose.msra.mxu0 0
      %176 = vmatprep.subr.bf16.mxu0 0
      %177 = vmatpush1.bf16.xpose.msra.mxu0 0
      %178 = vmatprep.subr.bf16.mxu0 0
      %179 = vmatpush1.bf16.xpose.msra.mxu0 0
      %180 = vmatprep.subr.bf16.mxu0 0
      %181 = vmatpush1.bf16.xpose.msra.mxu0 0
      %182 = vmatprep.subr.bf16.mxu0 0
      %183 = vmatpush1.bf16.xpose.msra.mxu0 0
      %184 = vmatprep.subr.bf16.mxu0 0
      %185 = vmatpush1.bf16.xpose.msra.mxu0 0
      %186 = vmatprep.subr.bf16.mxu0 0
      %187 = vmatpush1.bf16.xpose.msra.mxu0 0
      %188 = vmatprep.subr.bf16.mxu0 0
      %189 = vmatpush1.bf16.xpose.msra.mxu0 0
      %190 = vmatprep.subr.bf16.mxu0 0
      %191 = vmatpush1.bf16.xpose.msra.mxu0 0
      %192 = vmatprep.subr.bf16.mxu0 0
      %193 = vmatpush1.bf16.xpose.msra.mxu0 0
      %194 = vmatprep.subr.bf16.mxu0 0
      %195 = vmatpush1.bf16.xpose.msra.mxu0 0
      %196 = vmatprep.subr.bf16.mxu0 0
      %197 = vmatpush1.bf16.xpose.msra.mxu0 0
      %198 = vmatprep.subr.bf16.mxu0 0
      %199 = vmatpush1.bf16.xpose.msra.mxu0 0
      %200 = vmatprep.mubr.bf16.mxu0 0
      %201 = vmatmul.mubr.bf16.gmra.mrb[0].mxu0 %v163
      %v202 = vpop.f32.mrb[0].mxu0
      %v203 = vadd.f32 0.0, %v202
      %v204 = vpop.f32.mrb[0].mxu0
      %v205 = vpop.f32.mrb[0].mxu0
      %v206 = vpop.f32.mrb[0].mxu0
      %207 = vdwg.mxu0
      %v208 = vmul.f32 %v203, 0.25
      %v210 = vlaneseq
      %v211 = vshrl.u32 %v210, 7
      %v212 = vsub.s32 0, %v211
      %v213 = vrot.slane %v155, %v212
      %v215 = vadd.f32 %v208, %v213
      %vm216 = vcmask 64512
      %v217 = vsel %vm216, %v215, -inf
      %218 = vmax.xlane.f32.xlu0 %v217
      %v219 = vpop.xlane.xlu0 %218
      %v220 = vsub.f32 %v215, %v219
      %v221 = vmul.f32 %v220, 1.442695
      %v222 = vpow.pop %v221
      %v223 = vsel %vm216, %v222, 0.0
      %224 = vadd.xlane.f32.xlu0 %v223
      %v225 = vpop.xlane.xlu0 %224
      %v226 = vpack.c.bf16 %v222, %v222
      %227 = vrot.lane.b32.xlu0 %v158, 64
      %v228 = vpop.permute.xlu0 %227
      %v230 = vsel %vm216, %v226, 0
      %vm232 = vcmask 1043456
      %v234 = vsel %vm232, %v228, 0
      %236 = vmatprep.subr.bf16.mxu0 0
      %237 = vmatpush1.bf16.msra.mxu0 %v234
      %238 = vmatprep.subr.bf16.mxu0 0
      %239 = vmatpush1.bf16.msra.mxu0 0
      %240 = vmatprep.subr.bf16.mxu0 0
      %241 = vmatpush1.bf16.msra.mxu0 0
      %242 = vmatprep.subr.bf16.mxu0 0
      %243 = vmatpush1.bf16.msra.mxu0 0
      %244 = vmatprep.subr.bf16.mxu0 0
      %245 = vmatpush1.bf16.msra.mxu0 0
      %246 = vmatprep.subr.bf16.mxu0 0
      %247 = vmatpush1.bf16.msra.mxu0 0
      %248 = vmatprep.subr.bf16.mxu0 0
      %249 = vmatpush1.bf16.msra.mxu0 0
      %250 = vmatprep.subr.bf16.mxu0 0
      %251 = vmatpush1.bf16.msra.mxu0 0
      %252 = vmatprep.subr.bf16.mxu0 0
      %253 = vmatpush1.bf16.msra.mxu0 0
      %254 = vmatprep.subr.bf16.mxu0 0
      %255 = vmatpush1.bf16.msra.mxu0 0
      %256 = vmatprep.subr.bf16.mxu0 0
      %257 = vmatpush1.bf16.msra.mxu0 0
      %258 = vmatprep.subr.bf16.mxu0 0
      %259 = vmatpush1.bf16.msra.mxu0 0
      %260 = vmatprep.subr.bf16.mxu0 0
      %261 = vmatpush1.bf16.msra.mxu0 0
      %262 = vmatprep.subr.bf16.mxu0 0
      %263 = vmatpush1.bf16.msra.mxu0 0
      %264 = vmatprep.subr.bf16.mxu0 0
      %265 = vmatpush1.bf16.msra.mxu0 0
      %266 = vmatprep.subr.bf16.mxu0 0
      %267 = vmatpush1.bf16.msra.mxu0 0
      %268 = vmatprep.mubr.bf16.mxu0 0
      %269 = vmatmul.mubr.bf16.gmra.mrb[0].mxu0 %v230
      %v270 = vpop.f32.mrb[0].mxu0
      %v271 = vadd.f32 0.0, %v270
      %v272 = vpop.f32.mrb[0].mxu0
      %v273 = vpop.f32.mrb[0].mxu0
      %v274 = vpop.f32.mrb[0].mxu0
      %275 = vdwg.mxu0
      %v276 = vrcp.pop %v225
      %v277 = vmul.f32 %v271, %v276
      %278 = vrot.lane.b32.xlu0 %v158, 112
      %v279 = vpop.permute.xlu0 %278
      %280 = vrot.lane.b32.xlu0 %v158, 80
      %v281 = vpop.permute.xlu0 %280
      %v283 = vsel %vm161, %v279, 0
      %v286 = vsel %vm161, %v281, 0
      %288 = vmatprep.subr.bf16.mxu0 0
      %289 = vmatpush1.bf16.xpose.msra.mxu0 %v286
      %290 = vmatprep.subr.bf16.mxu0 0
      %291 = vmatpush1.bf16.xpose.msra.mxu0 0
      %292 = vmatprep.subr.bf16.mxu0 0
      %293 = vmatpush1.bf16.xpose.msra.mxu0 0
      %294 = vmatprep.subr.bf16.mxu0 0
      %295 = vmatpush1.bf16.xpose.msra.mxu0 0
      %296 = vmatprep.subr.bf16.mxu0 0
      %297 = vmatpush1.bf16.xpose.msra.mxu0 0
      %298 = vmatprep.subr.bf16.mxu0 0
      %299 = vmatpush1.bf16.xpose.msra.mxu0 0
      %300 = vmatprep.subr.bf16.mxu0 0
      %301 = vmatpush1.bf16.xpose.msra.mxu0 0
      %302 = vmatprep.subr.bf16.mxu0 0
      %303 = vmatpush1.bf16.xpose.msra.mxu0 0
      %304 = vmatprep.subr.bf16.mxu0 0
      %305 = vmatpush1.bf16.xpose.msra.mxu0 0
      %306 = vmatprep.subr.bf16.mxu0 0
      %307 = vmatpush1.bf16.xpose.msra.mxu0 0
      %308 = vmatprep.subr.bf16.mxu0 0
      %309 = vmatpush1.bf16.xpose.msra.mxu0 0
      %310 = vmatprep.subr.bf16.mxu0 0
      %311 = vmatpush1.bf16.xpose.msra.mxu0 0
      %312 = vmatprep.subr.bf16.mxu0 0
      %313 = vmatpush1.bf16.xpose.msra.mxu0 0
      %314 = vmatprep.subr.bf16.mxu0 0
      %315 = vmatpush1.bf16.xpose.msra.mxu0 0
      %316 = vmatprep.subr.bf16.mxu0 0
      %317 = vmatpush1.bf16.xpose.msra.mxu0 0
      %318 = vmatprep.subr.bf16.mxu0 0
      %319 = vmatpush1.bf16.xpose.msra.mxu0 0
      %320 = vmatprep.mubr.bf16.mxu0 0
      %321 = vmatmul.mubr.bf16.gmra.mrb[0].mxu0 %v283
      %v322 = vpop.f32.mrb[0].mxu0
      %v323 = vadd.f32 0.0, %v322
      %v324 = vpop.f32.mrb[0].mxu0
      %v325 = vpop.f32.mrb[0].mxu0
      %v326 = vpop.f32.mrb[0].mxu0
      %327 = vdwg.mxu0
      %v328 = vmul.f32 %v323, 0.25
      %v329 = vadd.f32 %v328, %v213
      %v330 = vsel %vm216, %v329, -inf
      %331 = vmax.xlane.f32.xlu0 %v330
      %v332 = vpop.xlane.xlu0 %331
      %v333 = vsub.f32 %v329, %v332
      %v334 = vmul.f32 %v333, 1.442695
      %v335 = vpow.pop %v334
      %v336 = vsel %vm216, %v335, 0.0
      %337 = vadd.xlane.f32.xlu0 %v336
      %v338 = vpop.xlane.xlu0 %337
      %v339 = vpack.c.bf16 %v335, %v335
      %340 = vrot.lane.b32.xlu0 %v158, 48
      %v341 = vpop.permute.xlu0 %340
      %v343 = vsel %vm216, %v339, 0
      %v346 = vsel %vm232, %v341, 0
      %348 = vmatprep.subr.bf16.mxu0 0
      %349 = vmatpush1.bf16.msra.mxu0 %v346
      %350 = vmatprep.subr.bf16.mxu0 0
      %351 = vmatpush1.bf16.msra.mxu0 0
      %352 = vmatprep.subr.bf16.mxu0 0
      %353 = vmatpush1.bf16.msra.mxu0 0
      %354 = vmatprep.subr.bf16.mxu0 0
      %355 = vmatpush1.bf16.msra.mxu0 0
      %356 = vmatprep.subr.bf16.mxu0 0
      %357 = vmatpush1.bf16.msra.mxu0 0
      %358 = vmatprep.subr.bf16.mxu0 0
      %359 = vmatpush1.bf16.msra.mxu0 0
      %360 = vmatprep.subr.bf16.mxu0 0
      %361 = vmatpush1.bf16.msra.mxu0 0
      %362 = vmatprep.subr.bf16.mxu0 0
      %363 = vmatpush1.bf16.msra.mxu0 0
      %364 = vmatprep.subr.bf16.mxu0 0
      %365 = vmatpush1.bf16.msra.mxu0 0
      %366 = vmatprep.subr.bf16.mxu0 0
      %367 = vmatpush1.bf16.msra.mxu0 0
      %368 = vmatprep.subr.bf16.mxu0 0
      %369 = vmatpush1.bf16.msra.mxu0 0
      %370 = vmatprep.subr.bf16.mxu0 0
      %371 = vmatpush1.bf16.msra.mxu0 0
      %372 = vmatprep.subr.bf16.mxu0 0
      %373 = vmatpush1.bf16.msra.mxu0 0
      %374 = vmatprep.subr.bf16.mxu0 0
      %375 = vmatpush1.bf16.msra.mxu0 0
      %376 = vmatprep.subr.bf16.mxu0 0
      %377 = vmatpush1.bf16.msra.mxu0 0
      %378 = vmatprep.subr.bf16.mxu0 0
      %379 = vmatpush1.bf16.msra.mxu0 0
      %380 = vmatprep.mubr.bf16.mxu0 0
      %381 = vmatmul.mubr.bf16.gmra.mrb[0].mxu0 %v343
      %v382 = vpop.f32.mrb[0].mxu0
      %v383 = vadd.f32 0.0, %v382
      %v384 = vpop.f32.mrb[0].mxu0
      %v385 = vpop.f32.mrb[0].mxu0
      %v386 = vpop.f32.mrb[0].mxu0
      %387 = vdwg.mxu0
      %v388 = vrcp.pop %v338
      %v389 = vmul.f32 %v383, %v388
      %391 = vrot.lane.b32.xlu0 %v389, 16
      %v392 = vpop.permute.xlu0 %391
      %v394 = vsel %vm161, %v277, %v392
      %v395 = vpack.c.bf16 %v394, %v394
      %vm396 = vcmask 257024
      %397 = vst.msk [vmem:[%s152] sm:$0xf] %vm396, %v395
      %p398 = scmp.lt.s32.totalorder %s13, 1
      %s399 = scalar_select %p398, %s13, 1
      %s400 = smul.addr %s399, 4
      %s401 = scalar_lea.vmem %s2, %s400
      // Predicated region
      $region29: #{encoder_forward.15} parent=27 // pred_check
        %p402 = pneg %p83
      $region30: #{encoder_forward.15} parent=27 // pred_check_branch
        %404 = sbr.rel (%p402) target = $region32
      $region31: #{encoder_forward.15} parent=27 // pred_region
        _
      $region32: #{encoder_forward.15} parent=27 // pred_fallthru
        _
    $region28: #{encoder_forward.15} parent=5 // pred_fallthru
      _
    %p405 = scmp.le.s32.totalorder 2, %s8
    // Predicated region
    $region33: #{encoder_forward.15} parent=5 // pred_check
      %p406 = pneg %p405
    $region34: #{encoder_forward.15} parent=5 // pred_check_branch
      %408 = sbr.rel (%p406) target = $region36
    $region35: #{encoder_forward.15} parent=5 // pred_region
      %s409 = ssub.s32 %s8, 2
      // Predicated region
      $region37: #{encoder_forward.15} parent=35 // pred_check
        %p410 = pneg %p89
      $region38: #{encoder_forward.15} parent=35 // pred_check_branch
        %412 = sbr.rel (%p410) target = $region40
      $region39: #{encoder_forward.15} parent=35 // pred_region
        %p413 = scmp.lt.s32.totalorder %s14, 1
        %s414 = scalar_select %p413, %s14, 1
        %s415 = smul.addr %s414, 4
        %s416 = scalar_lea.vmem %s2, %s415
      $region40: #{encoder_forward.15} parent=35 // pred_fallthru
        _
    $region36: #{encoder_forward.15} parent=5 // pred_fallthru
      _
  $region6: #{encoder_forward.15} parent=0 // loop_footer
    %s12 = sadd.s32 1, %s8
  $region7: #{encoder_forward.15} parent=0 // loop_footer_branch
    %7 = sbr.rel target = $region3
  $region8: #{encoder_forward.15} parent=0 // loop_exit
    _

// kernel: encoder_forward.14
$region0: #{encoder_forward.14}
  #allocation0 [shape = 'u32[]', space=smem, size = 0x4, offset = 0x4, fixed_abs, tag = 'smem constant byte address 0x4 - core index']
  #allocation1 [shape = 'u32[144,128]{1,0:T(1,128)}', space=vmem, size = 0x12000, scoped, tag = 'internal scratch']
  #allocation2 [shape = 'f32[16,96]{1,0:T(8,128)}', space=vmem, size = 0x2000, scoped, tag = 'scratch operand']
  %s0 = inlined_call_operand.vmem [shape: bf16[16,32], index: 0, kind: input, shape index: {}]
  %s1 = inlined_call_operand.vmem [shape: bf16[32,96], index: 1, kind: input, shape index: {}]
  %s2 = inlined_call_operand.vmem [shape: f32[1,96], index: 2, kind: input, shape index: {}]
  %s3 = inlined_call_operand.vmem [shape: bf16[16,96], index: 3, kind: output, shape index: {}]
  %s4 = sld [smem:[#allocation0]]
  $region30: #{encoder_forward.14} parent=0
    _
  %s6 = ssub.s32 1, %s4
  %s7 = scalar_select 0, %s6, %s4
  // Predicated region
  $region2: #{encoder_forward.14} parent=0 // pred_check
    _
  $region3: #{encoder_forward.14} parent=0 // pred_check_branch
    %9 = sbr.rel (0) target = $region5
  $region4: #{encoder_forward.14} parent=0 // pred_region
    _
  $region5: #{encoder_forward.14} parent=0 // pred_fallthru
    _
  // Predicated region
  $region6: #{encoder_forward.14} parent=0 // pred_check
    _
  $region7: #{encoder_forward.14} parent=0 // pred_check_branch
    %11 = sbr.rel (0) target = $region9
  $region8: #{encoder_forward.14} parent=0 // pred_region
    _
  $region9: #{encoder_forward.14} parent=0 // pred_fallthru
    _
  // Predicated region
  $region10: #{encoder_forward.14} parent=0 // pred_check
    _
  $region11: #{encoder_forward.14} parent=0 // pred_check_branch
    %13 = sbr.rel (0) target = $region13
  $region12: #{encoder_forward.14} parent=0 // pred_region
    _
  $region13: #{encoder_forward.14} parent=0 // pred_fallthru
    _
  %p15 = scmp.eq.s32.totalorder 0, 0
  // Predicated region
  $region14: #{encoder_forward.14} parent=0 // pred_check
    %p16 = pneg %p15
  $region15: #{encoder_forward.14} parent=0 // pred_check_branch
    %18 = sbr.rel (%p16) target = $region17
  $region16: #{encoder_forward.14} parent=0 // pred_region
    %vm19 = vcmask 785408
    %20 = vst.msk [vmem:[#allocation2] sm:$0xff] %vm19, 0.0
    %21 = vst.msk [vmem:[#allocation2 + $0x8] sm:$0xff] %vm19, 0.0
  $region17: #{encoder_forward.14} parent=0 // pred_fallthru
    _
  %v22 = vld [vmem:[#allocation2] sm:$0xff]
  %v23 = vld [vmem:[#allocation2 + $0x8] sm:$0xff]
  %v24 = vld [vmem:[%s0] sm:$0xf]
  %v25 = vld [vmem:[%s0 + $0x4] sm:$0xf]
  %v26 = vld [vmem:[%s1] sm:$0xf]
  %v27 = vld [vmem:[%s1 + $0x4] sm:$0xf]
  %v28 = vld [vmem:[%s1 + $0x8] sm:$0xf]
  %v29 = vld [vmem:[%s1 + $0xc] sm:$0xf]
  %v32 = vunpack.c.l.b16 %v24
  %v33 = vunpack.c.l.b16 %v25
  %v34 = vpack.c.b16 %v33, %v32
  %v39 = vunpack.c.l.b16 %v26
  %v40 = vunpack.c.l.b16 %v27
  %v41 = vunpack.c.l.b16 %v28
  %v42 = vunpack.c.l.b16 %v29
  %v43 = vpack.c.b16 %v40, %v39
  %v44 = vpack.c.b16 %v42, %v41
  %vm47 = vcmask 261120
  %v49 = vsel %vm47, %v34, 0
  %51 = vmatprep.subr.bf16.mxu0 0
  %52 = vmatpush1.bf16.msra.mxu0 %v43
  %53 = vmatprep.subr.bf16.mxu0 0
  %54 = vmatpush1.bf16.msra.mxu0 %v44
  %55 = vmatprep.subr.bf16.mxu0 0
  %56 = vmatpush1.bf16.msra.mxu0 0
  %57 = vmatprep.subr.bf16.mxu0 0
  %58 = vmatpush1.bf16.msra.mxu0 0
  %59 = vmatprep.subr.bf16.mxu0 0
  %60 = vmatpush1.bf16.msra.mxu0 0
  %61 = vmatprep.subr.bf16.mxu0 0
  %62 = vmatpush1.bf16.msra.mxu0 0
  %63 = vmatprep.subr.bf16.mxu0 0
  %64 = vmatpush1.bf16.msra.mxu0 0
  %65 = vmatprep.subr.bf16.mxu0 0
  %66 = vmatpush1.bf16.msra.mxu0 0
  %67 = vmatprep.subr.bf16.mxu0 0
  %68 = vmatpush1.bf16.msra.mxu0 0
  %69 = vmatprep.subr.bf16.mxu0 0
  %70 = vmatpush1.bf16.msra.mxu0 0
  %71 = vmatprep.subr.bf16.mxu0 0
  %72 = vmatpush1.bf16.msra.mxu0 0
  %73 = vmatprep.subr.bf16.mxu0 0
  %74 = vmatpush1.bf16.msra.mxu0 0
  %75 = vmatprep.subr.bf16.mxu0 0
  %76 = vmatpush1.bf16.msra.mxu0 0
  %77 = vmatprep.subr.bf16.mxu0 0
  %78 = vmatpush1.bf16.msra.mxu0 0
  %79 = vmatprep.subr.bf16.mxu0 0
  %80 = vmatpush1.bf16.msra.mxu0 0
  %81 = vmatprep.subr.bf16.mxu0 0
  %82 = vmatpush1.bf16.msra.mxu0 0
  %83 = vmatprep.mubr.bf16.mxu0 0
  %84 = vmatmul.mubr.bf16.gmra.mrb[0].mxu0 %v49
  %v85 = vpop.f32.mrb[0].mxu0
  %v86 = vadd.f32 0.0, %v85
  %v87 = vpop.f32.mrb[0].mxu0
  %v88 = vpop.f32.mrb[0].mxu0
  %v89 = vadd.f32 0.0, %v88
  %v90 = vpop.f32.mrb[0].mxu0
  %91 = vdwg.mxu0
  %v92 = vadd.f32 %v22, %v86
  %v93 = vadd.f32 %v23, %v89
  %vm94 = vcmask 785408
  %95 = vst.msk [vmem:[#allocation2] sm:$0xff] %vm94, %v92
  %96 = vst.msk [vmem:[#allocation2 + $0x8] sm:$0xff] %vm94, %v93
  // Predicated region
  $region18: #{encoder_forward.14} parent=0 // pred_check
    %p97 = pneg %p15
  $region19: #{encoder_forward.14} parent=0 // pred_check_branch
    %99 = sbr.rel (%p97) target = $region21
  $region20: #{encoder_forward.14} parent=0 // pred_region
    %v100 = vld [vmem:[#allocation2] sm:$0xff]
    %v101 = vld [vmem:[#allocation2 + $0x8] sm:$0xff]
    %v102 = vld [vmem:[%s2] sm:$0x1]
    %v104 = vlaneseq
    %v105 = vshrl.u32 %v104, 7
    %v106 = vsub.s32 0, %v105
    %v107 = vrot.slane %v102, %v106
    %v109 = vadd.f32 %v100, %v107
    %v110 = vadd.f32 %v101, %v107
    %v111 = vpack.c.bf16 %v110, %v109
    %v113 = vunpack.c.l.b16 %v111
    %v114 = vunpack.c.h.b16 %v111
    %v115 = vpack.c.b16 %v113, %v113
    %v116 = vpack.c.b16 %v114, %v114
    %vm119 = vcmask 781312
    %120 = vst.msk [vmem:[%s3] sm:$0xf] %vm119, %v115
    %121 = vst.msk [vmem:[%s3 + $0x4] sm:$0xf] %vm119, %v116
  $region21: #{encoder_forward.14} parent=0 // pred_fallthru
    _
  // Predicated region
  $region22: #{encoder_forward.14} parent=0 // pred_check
    _
  $region23: #{encoder_forward.14} parent=0 // pred_check_branch
    %123 = sbr.rel (0) target = $region25
  $region24: #{encoder_forward.14} parent=0 // pred_region
    _
  $region25: #{encoder_forward.14} parent=0 // pred_fallthru
    _
  // Predicated region
  $region26: #{encoder_forward.14} parent=0 // pred_check
    _
  $region27: #{encoder_forward.14} parent=0 // pred_check_branch
    %125 = sbr.rel (0) target = $region29
  $region28: #{encoder_forward.14} parent=0 // pred_region
    _
  $region29: #{encoder_forward.14} parent=0 // pred_fallthru
    _

// kernel: encoder_forward.13
$region0: #{encoder_forward.13}
  #allocation0 [shape = 'u32[]', space=smem, size = 0x4, offset = 0x4, fixed_abs, tag = 'smem constant byte address 0x4 - core index']
  #allocation1 [shape = 'u32[144,128]{1,0:T(1,128)}', space=vmem, size = 0x12000, scoped, tag = 'internal scratch']
  %s0 = inlined_call_operand.vmem [shape: bf16[16,32], index: 0, kind: input, shape index: {}]
  %s1 = inlined_call_operand.vmem [shape: f32[1,32], index: 1, kind: input, shape index: {}]
  %s2 = inlined_call_operand.vmem [shape: f32[1,32], index: 2, kind: input, shape index: {}]
  %s3 = inlined_call_operand.vmem [shape: bf16[16,32], index: 3, kind: output, shape index: {}]
  %s4 = sld [smem:[#allocation0]]
  $region22: #{encoder_forward.13} parent=0
    _
  %s6 = ssub.s32 1, %s4
  %s7 = scalar_select 0, %s6, %s4
  // Predicated region
  $region2: #{encoder_forward.13} parent=0 // pred_check
    _
  $region3: #{encoder_forward.13} parent=0 // pred_check_branch
    %9 = sbr.rel (0) target = $region5
  $region4: #{encoder_forward.13} parent=0 // pred_region
    _
  $region5: #{encoder_forward.13} parent=0 // pred_fallthru
    _
  // Predicated region
  $region6: #{encoder_forward.13} parent=0 // pred_check
    _
  $region7: #{encoder_forward.13} parent=0 // pred_check_branch
    %11 = sbr.rel (0) target = $region9
  $region8: #{encoder_forward.13} parent=0 // pred_region
    _
  $region9: #{encoder_forward.13} parent=0 // pred_fallthru
    _
  // Predicated region
  $region10: #{encoder_forward.13} parent=0 // pred_check
    _
  $region11: #{encoder_forward.13} parent=0 // pred_check_branch
    %13 = sbr.rel (0) target = $region13
  $region12: #{encoder_forward.13} parent=0 // pred_region
    _
  $region13: #{encoder_forward.13} parent=0 // pred_fallthru
    _
  %v14 = vld [vmem:[%s0] sm:$0xf]
  %v15 = vld [vmem:[%s0 + $0x4] sm:$0xf]
  %v16 = vunpack.c.l.bf16 %v14
  %v17 = vunpack.c.l.bf16 %v15
  %vm18 = vcmask 261120
  %v19 = vsel %vm18, %v16, 0.0
  %20 = vadd.xlane.f32.xlu0 %v19
  %v21 = vpop.xlane.xlu0 %20
  %v22 = vsel %vm18, %v17, 0.0
  %23 = vadd.xlane.f32.xlu0 %v22
  %v24 = vpop.xlane.xlu0 %23
  %v25 = vrcp.pop 32.0
  %v26 = vmul.f32 %v21, %v25
  %v27 = vmul.f32 %v24, %v25
  %v28 = vsub.f32 %v16, %v26
  %v29 = vsub.f32 %v17, %v27
  %v30 = vmul.f32 %v28, %v28
  %v31 = vmul.f32 %v29, %v29
  %v32 = vsel %vm18, %v30, 0.0
  %33 = vadd.xlane.f32.xlu0 %v32
  %v34 = vpop.xlane.xlu0 %33
  %v35 = vsel %vm18, %v31, 0.0
  %36 = vadd.xlane.f32.xlu0 %v35
  %v37 = vpop.xlane.xlu0 %36
  %v38 = vmul.f32 %v34, %v25
  %v39 = vmul.f32 %v37, %v25
  %v40 = vadd.f32 %v38, 1e-12
  %v41 = vadd.f32 %v39, 1e-12
  %v42 = vrsqrt.pop %v40
  %v43 = vrsqrt.pop %v41
  %v44 = vmul.f32 %v28, %v42
  %v45 = vmul.f32 %v29, %v43
  %v46 = vld [vmem:[%s1] sm:$0x1]
  %v48 = vlaneseq
  %v49 = vshrl.u32 %v48, 7
  %v50 = vsub.s32 0, %v49
  %v51 = vrot.slane %v46, %v50
  %v53 = vmul.f32 %v44, %v51
  %v54 = vmul.f32 %v45, %v51
  %v55 = vld [vmem:[%s2] sm:$0x1]
  %v57 = vlaneseq
  %v58 = vshrl.u32 %v57, 7
  %v59 = vsub.s32 0, %v58
  %v60 = vrot.slane %v55, %v59
  %v62 = vadd.f32 %v53, %v60
  %v63 = vadd.f32 %v54, %v60
  %v64 = vpack.c.bf16 %v63, %v62
  %v66 = vunpack.c.l.b16 %v64
  %v67 = vunpack.c.h.b16 %v64
  %v68 = vpack.c.b16 %v66, %v66
  %v69 = vpack.c.b16 %v67, %v67
  %vm72 = vcmask 257024
  %73 = vst.msk [vmem:[%s3] sm:$0xf] %vm72, %v68
  %74 = vst.msk [vmem:[%s3 + $0x4] sm:$0xf] %vm72, %v69
  // Predicated region
  $region14: #{encoder_forward.13} parent=0 // pred_check
    _
  $region15: #{encoder_forward.13} parent=0 // pred_check_branch
    %76 = sbr.rel (0) target = $region17
  $region16: #{encoder_forward.13} parent=0 // pred_region
    _
  $region17: #{encoder_forward.13} parent=0 // pred_fallthru
    _
  // Predicated region
  $region18: #{encoder_forward.13} parent=0 // pred_check
    _
  $region19: #{encoder_forward.13} parent=0 // pred_check_branch
    %78 = sbr.rel (0) target = $region21
  $region20: #{encoder_forward.13} parent=0 // pred_region
    _
  $region21: #{encoder_forward.13} parent=0 // pred_fallthru
    _

// kernel: encoder_forward.16
$region0: #{encoder_forward.16}
  #allocation0 [shape = 'u32[]', space=smem, size = 0x4, offset = 0x4, fixed_abs, tag = 'smem constant byte address 0x4 - core index']
  #allocation1 [shape = 'u32[144,128]{1,0:T(1,128)}', space=vmem, size = 0x12000, scoped, tag = 'internal scratch']
  #allocation2 [shape = 'f32[16,32]{1,0:T(8,128)}', space=vmem, size = 0x2000, scoped, tag = 'scratch operand']
  %s0 = inlined_call_operand.vmem [shape: bf16[16,32], index: 0, kind: input, shape index: {}]
  %s1 = inlined_call_operand.vmem [shape: bf16[32,32], index: 1, kind: input, shape index: {}]
  %s2 = inlined_call_operand.vmem [shape: f32[1,32], index: 2, kind: input, shape index: {}]
  %s3 = inlined_call_operand.vmem [shape: bf16[16,32], index: 3, kind: input, shape index: {}]
  %s4 = inlined_call_operand.vmem [shape: f32[1,32], index: 4, kind: input, shape index: {}]
  %s5 = inlined_call_operand.vmem [shape: f32[1,32], index: 5, kind: input, shape index: {}]
  %s6 = inlined_call_operand.vmem [shape: bf16[16,32], index: 6, kind: output, shape index: {}]
  %s7 = sld [smem:[#allocation0]]
  $region42: #{encoder_forward.16} parent=0
    _
  %s9 = ssub.s32 1, %s7
  %s10 = scalar_select 0, %s9, %s7
  // Predicated region
  $region2: #{encoder_forward.16} parent=0 // pred_check
    _
  $region3: #{encoder_forward.16} parent=0 // pred_check_branch
    %12 = sbr.rel (0) target = $region5
  $region4: #{encoder_forward.16} parent=0 // pred_region
    _
  $region5: #{encoder_forward.16} parent=0 // pred_fallthru
    _
  // Predicated region
  $region6: #{encoder_forward.16} parent=0 // pred_check
    _
  $region7: #{encoder_forward.16} parent=0 // pred_check_branch
    %14 = sbr.rel (0) target = $region9
  $region8: #{encoder_forward.16} parent=0 // pred_region
    _
  $region9: #{encoder_forward.16} parent=0 // pred_fallthru
    _
  // Predicated region
  $region10: #{encoder_forward.16} parent=0 // pred_check
    _
  $region11: #{encoder_forward.16} parent=0 // pred_check_branch
    %16 = sbr.rel (0) target = $region13
  $region12: #{encoder_forward.16} parent=0 // pred_region
    _
  $region13: #{encoder_forward.16} parent=0 // pred_fallthru
    _
  // Predicated region
  $region14: #{encoder_forward.16} parent=0 // pred_check
    _
  $region15: #{encoder_forward.16} parent=0 // pred_check_branch
    %18 = sbr.rel (0) target = $region17
  $region16: #{encoder_forward.16} parent=0 // pred_region
    _
  $region17: #{encoder_forward.16} parent=0 // pred_fallthru
    _
  // Predicated region
  $region18: #{encoder_forward.16} parent=0 // pred_check
    _
  $region19: #{encoder_forward.16} parent=0 // pred_check_branch
    %20 = sbr.rel (0) target = $region21
  $region20: #{encoder_forward.16} parent=0 // pred_region
    _
  $region21: #{encoder_forward.16} parent=0 // pred_fallthru
    _
  // Predicated region
  $region22: #{encoder_forward.16} parent=0 // pred_check
    _
  $region23: #{encoder_forward.16} parent=0 // pred_check_branch
    %22 = sbr.rel (0) target = $region25
  $region24: #{encoder_forward.16} parent=0 // pred_region
    _
  $region25: #{encoder_forward.16} parent=0 // pred_fallthru
    _
  %p24 = scmp.eq.s32.totalorder 0, 0
  // Predicated region
  $region26: #{encoder_forward.16} parent=0 // pred_check
    %p25 = pneg %p24
  $region27: #{encoder_forward.16} parent=0 // pred_check_branch
    %27 = sbr.rel (%p25) target = $region29
  $region28: #{encoder_forward.16} parent=0 // pred_region
    %vm28 = vcmask 261120
    %29 = vst.msk [vmem:[#allocation2] sm:$0xff] %vm28, 0.0
    %30 = vst.msk [vmem:[#allocation2 + $0x8] sm:$0xff] %vm28, 0.0
  $region29: #{encoder_forward.16} parent=0 // pred_fallthru
    _
  %v31 = vld [vmem:[#allocation2] sm:$0xff]
  %v32 = vld [vmem:[#allocation2 + $0x8] sm:$0xff]
  %v33 = vld [vmem:[%s0] sm:$0xf]
  %v34 = vld [vmem:[%s0 + $0x4] sm:$0xf]
  %v35 = vld [vmem:[%s1] sm:$0xf]
  %v36 = vld [vmem:[%s1 + $0x4] sm:$0xf]
  %v37 = vld [vmem:[%s1 + $0x8] sm:$0xf]
  %v38 = vld [vmem:[%s1 + $0xc] sm:$0xf]
  %v41 = vunpack.c.l.b16 %v33
  %v42 = vunpack.c.l.b16 %v34
  %v43 = vpack.c.b16 %v42, %v41
  %v48 = vunpack.c.l.b16 %v35
  %v49 = vunpack.c.l.b16 %v36
  %v50 = vunpack.c.l.b16 %v37
  %v51 = vunpack.c.l.b16 %v38
  %v52 = vpack.c.b16 %v49, %v48
  %v53 = vpack.c.b16 %v51, %v50
  %vm56 = vcmask 261120
  %v58 = vsel %vm56, %v43, 0
  %60 = vmatprep.subr.bf16.mxu0 0
  %61 = vmatpush1.bf16.msra.mxu0 %v52
  %62 = vmatprep.subr.bf16.mxu0 0
  %63 = vmatpush1.bf16.msra.mxu0 %v53
  %64 = vmatprep.subr.bf16.mxu0 0
  %65 = vmatpush1.bf16.msra.mxu0 0
  %66 = vmatprep.subr.bf16.mxu0 0
  %67 = vmatpush1.bf16.msra.mxu0 0
  %68 = vmatprep.subr.bf16.mxu0 0
  %69 = vmatpush1.bf16.msra.mxu0 0
  %70 = vmatprep.subr.bf16.mxu0 0
  %71 = vmatpush1.bf16.msra.mxu0 0
  %72 = vmatprep.subr.bf16.mxu0 0
  %73 = vmatpush1.bf16.msra.mxu0 0
  %74 = vmatprep.subr.bf16.mxu0 0
  %75 = vmatpush1.bf16.msra.mxu0 0
  %76 = vmatprep.subr.bf16.mxu0 0
  %77 = vmatpush1.bf16.msra.mxu0 0
  %78 = vmatprep.subr.bf16.mxu0 0
  %79 = vmatpush1.bf16.msra.mxu0 0
  %80 = vmatprep.subr.bf16.mxu0 0
  %81 = vmatpush1.bf16.msra.mxu0 0
  %82 = vmatprep.subr.bf16.mxu0 0
  %83 = vmatpush1.bf16.msra.mxu0 0
  %84 = vmatprep.subr.bf16.mxu0 0
  %85 = vmatpush1.bf16.msra.mxu0 0
  %86 = vmatprep.subr.bf16.mxu0 0
  %87 = vmatpush1.bf16.msra.mxu0 0
  %88 = vmatprep.subr.bf16.mxu0 0
  %89 = vmatpush1.bf16.msra.mxu0 0
  %90 = vmatprep.subr.bf16.mxu0 0
  %91 = vmatpush1.bf16.msra.mxu0 0
  %92 = vmatprep.mubr.bf16.mxu0 0
  %93 = vmatmul.mubr.bf16.gmra.mrb[0].mxu0 %v58
  %v94 = vpop.f32.mrb[0].mxu0
  %v95 = vadd.f32 0.0, %v94
  %v96 = vpop.f32.mrb[0].mxu0
  %v97 = vpop.f32.mrb[0].mxu0
  %v98 = vadd.f32 0.0, %v97
  %v99 = vpop.f32.mrb[0].mxu0
  %100 = vdwg.mxu0
  %v101 = vadd.f32 %v31, %v95
  %v102 = vadd.f32 %v32, %v98
  %103 = vst.msk [vmem:[#allocation2] sm:$0xff] %vm56, %v101
  %104 = vst.msk [vmem:[#allocation2 + $0x8] sm:$0xff] %vm56, %v102
  // Predicated region
  $region30: #{encoder_forward.16} parent=0 // pred_check
    %p105 = pneg %p24
  $region31: #{encoder_forward.16} parent=0 // pred_check_branch
    %107 = sbr.rel (%p105) target = $region33
  $region32: #{encoder_forward.16} parent=0 // pred_region
    %v108 = vld [vmem:[#allocation2] sm:$0xff]
    %v109 = vld [vmem:[#allocation2 + $0x8] sm:$0xff]
    %v110 = vld [vmem:[%s2] sm:$0x1]
    %v112 = vlaneseq
    %v113 = vshrl.u32 %v112, 7
    %v114 = vsub.s32 0, %v113
    %v115 = vrot.slane %v110, %v114
    %v117 = vadd.f32 %v108, %v115
    %v118 = vadd.f32 %v109, %v115
    %v119 = vld [vmem:[%s3] sm:$0xf]
    %v120 = vld [vmem:[%s3 + $0x4] sm:$0xf]
    %v121 = vunpack.c.l.bf16 %v119
    %v122 = vunpack.c.l.bf16 %v120
    %v123 = vadd.f32 %v117, %v121
    %v124 = vadd.f32 %v118, %v122
    %v125 = vsel %vm56, %v123, 0.0
    %126 = vadd.xlane.f32.xlu0 %v125
    %v127 = vpop.xlane.xlu0 %126
    %v128 = vsel %vm56, %v124, 0.0
    %129 = vadd.xlane.f32.xlu0 %v128
    %v130 = vpop.xlane.xlu0 %129
    %v131 = vrcp.pop 32.0
    %v132 = vmul.f32 %v127, %v131
    %v133 = vmul.f32 %v130, %v131
    %v134 = vsub.f32 %v123, %v132
    %v135 = vsub.f32 %v124, %v133
    %v136 = vmul.f32 %v134, %v134
    %v137 = vmul.f32 %v135, %v135
    %v138 = vsel %vm56, %v136, 0.0
    %139 = vadd.xlane.f32.xlu0 %v138
    %v140 = vpop.xlane.xlu0 %139
    %v141 = vsel %vm56, %v137, 0.0
    %142 = vadd.xlane.f32.xlu0 %v141
    %v143 = vpop.xlane.xlu0 %142
    %v144 = vmul.f32 %v140, %v131
    %v145 = vmul.f32 %v143, %v131
    %v146 = vadd.f32 %v144, 1e-12
    %v147 = vadd.f32 %v145, 1e-12
    %v148 = vrsqrt.pop %v146
    %v149 = vrsqrt.pop %v147
    %v150 = vmul.f32 %v134, %v148
    %v151 = vmul.f32 %v135, %v149
    %v152 = vld [vmem:[%s4] sm:$0x1]
    %v154 = vlaneseq
    %v155 = vshrl.u32 %v154, 7
    %v156 = vsub.s32 0, %v155
    %v157 = vrot.slane %v152, %v156
    %v159 = vmul.f32 %v150, %v157
    %v160 = vmul.f32 %v151, %v157
    %v161 = vld [vmem:[%s5] sm:$0x1]
    %v163 = vlaneseq
    %v164 = vshrl.u32 %v163, 7
    %v165 = vsub.s32 0, %v164
    %v166 = vrot.slane %v161, %v165
    %v168 = vadd.f32 %v159, %v166
    %v169 = vadd.f32 %v160, %v166
    %v170 = vpack.c.bf16 %v169, %v168
    %v172 = vunpack.c.l.b16 %v170
    %v173 = vunpack.c.h.b16 %v170
    %v174 = vpack.c.b16 %v172, %v172
    %v175 = vpack.c.b16 %v173, %v173
    %vm178 = vcmask 257024
    %179 = vst.msk [vmem:[%s6] sm:$0xf] %vm178, %v174
    %180 = vst.msk [vmem:[%s6 + $0x4] sm:$0xf] %vm178, %v175
  $region33: #{encoder_forward.16} parent=0 // pred_fallthru
    _
  // Predicated region
  $region34: #{encoder_forward.16} parent=0 // pred_check
    _
  $region35: #{encoder_forward.16} parent=0 // pred_check_branch
    %182 = sbr.rel (0) target = $region37
  $region36: #{encoder_forward.16} parent=0 // pred_region
    _
  $region37: #{encoder_forward.16} parent=0 // pred_fallthru
    _
  // Predicated region
  $region38: #{encoder_forward.16} parent=0 // pred_check
    _
  $region39: #{encoder_forward.16} parent=0 // pred_check_branch
    %184 = sbr.rel (0) target = $region41
  $region40: #{encoder_forward.16} parent=0 // pred_region
    _
  $region41: #{encoder_forward.16} parent=0 // pred_fallthru
    _

// kernel: encoder_forward.17
$region0: #{encoder_forward.17}
  #allocation0 [shape = 'u32[]', space=smem, size = 0x4, offset = 0x4, fixed_abs, tag = 'smem constant byte address 0x4 - core index']
  #allocation1 [shape = 'u32[144,128]{1,0:T(1,128)}', space=vmem, size = 0x12000, scoped, tag = 'internal scratch']
  #allocation2 [shape = 'f32[16,64]{1,0:T(8,128)}', space=vmem, size = 0x2000, scoped, tag = 'scratch operand']
  %s0 = inlined_call_operand.vmem [shape: bf16[16,32], index: 0, kind: input, shape index: {}]
  %s1 = inlined_call_operand.vmem [shape: bf16[32,64], index: 1, kind: input, shape index: {}]
  %s2 = inlined_call_operand.vmem [shape: f32[1,64], index: 2, kind: input, shape index: {}]
  %s3 = inlined_call_operand.vmem [shape: bf16[16,64], index: 3, kind: output, shape index: {}]
  %s4 = sld [smem:[#allocation0]]
  $region30: #{encoder_forward.17} parent=0
    _
  %s6 = ssub.s32 1, %s4
  %s7 = scalar_select 0, %s6, %s4
  // Predicated region
  $region2: #{encoder_forward.17} parent=0 // pred_check
    _
  $region3: #{encoder_forward.17} parent=0 // pred_check_branch
    %9 = sbr.rel (0) target = $region5
  $region4: #{encoder_forward.17} parent=0 // pred_region
    _
  $region5: #{encoder_forward.17} parent=0 // pred_fallthru
    _
  // Predicated region
  $region6: #{encoder_forward.17} parent=0 // pred_check
    _
  $region7: #{encoder_forward.17} parent=0 // pred_check_branch
    %11 = sbr.rel (0) target = $region9
  $region8: #{encoder_forward.17} parent=0 // pred_region
    _
  $region9: #{encoder_forward.17} parent=0 // pred_fallthru
    _
  // Predicated region
  $region10: #{encoder_forward.17} parent=0 // pred_check
    _
  $region11: #{encoder_forward.17} parent=0 // pred_check_branch
    %13 = sbr.rel (0) target = $region13
  $region12: #{encoder_forward.17} parent=0 // pred_region
    _
  $region13: #{encoder_forward.17} parent=0 // pred_fallthru
    _
  %p15 = scmp.eq.s32.totalorder 0, 0
  // Predicated region
  $region14: #{encoder_forward.17} parent=0 // pred_check
    %p16 = pneg %p15
  $region15: #{encoder_forward.17} parent=0 // pred_check_branch
    %18 = sbr.rel (%p16) target = $region17
  $region16: #{encoder_forward.17} parent=0 // pred_region
    %vm19 = vcmask 523264
    %20 = vst.msk [vmem:[#allocation2] sm:$0xff] %vm19, 0.0
    %21 = vst.msk [vmem:[#allocation2 + $0x8] sm:$0xff] %vm19, 0.0
  $region17: #{encoder_forward.17} parent=0 // pred_fallthru
    _
  %v22 = vld [vmem:[#allocation2] sm:$0xff]
  %v23 = vld [vmem:[#allocation2 + $0x8] sm:$0xff]
  %v24 = vld [vmem:[%s0] sm:$0xf]
  %v25 = vld [vmem:[%s0 + $0x4] sm:$0xf]
  %v26 = vld [vmem:[%s1] sm:$0xf]
  %v27 = vld [vmem:[%s1 + $0x4] sm:$0xf]
  %v28 = vld [vmem:[%s1 + $0x8] sm:$0xf]
  %v29 = vld [vmem:[%s1 + $0xc] sm:$0xf]
  %v32 = vunpack.c.l.b16 %v24
  %v33 = vunpack.c.l.b16 %v25
  %v34 = vpack.c.b16 %v33, %v32
  %v39 = vunpack.c.l.b16 %v26
  %v40 = vunpack.c.l.b16 %v27
  %v41 = vunpack.c.l.b16 %v28
  %v42 = vunpack.c.l.b16 %v29
  %v43 = vpack.c.b16 %v40, %v39
  %v44 = vpack.c.b16 %v42, %v41
  %vm47 = vcmask 261120
  %v49 = vsel %vm47, %v34, 0
  %51 = vmatprep.subr.bf16.mxu0 0
  %52 = vmatpush1.bf16.msra.mxu0 %v43
  %53 = vmatprep.subr.bf16.mxu0 0
  %54 = vmatpush1.bf16.msra.mxu0 %v44
  %55 = vmatprep.subr.bf16.mxu0 0
  %56 = vmatpush1.bf16.msra.mxu0 0
  %57 = vmatprep.subr.bf16.mxu0 0
  %58 = vmatpush1.bf16.msra.mxu0 0
  %59 = vmatprep.subr.bf16.mxu0 0
  %60 = vmatpush1.bf16.msra.mxu0 0
  %61 = vmatprep.subr.bf16.mxu0 0
  %62 = vmatpush1.bf16.msra.mxu0 0
  %63 = vmatprep.subr.bf16.mxu0 0
  %64 = vmatpush1.bf16.msra.mxu0 0
  %65 = vmatprep.subr.bf16.mxu0 0
  %66 = vmatpush1.bf16.msra.mxu0 0
  %67 = vmatprep.subr.bf16.mxu0 0
  %68 = vmatpush1.bf16.msra.mxu0 0
  %69 = vmatprep.subr.bf16.mxu0 0
  %70 = vmatpush1.bf16.msra.mxu0 0
  %71 = vmatprep.subr.bf16.mxu0 0
  %72 = vmatpush1.bf16.msra.mxu0 0
  %73 = vmatprep.subr.bf16.mxu0 0
  %74 = vmatpush1.bf16.msra.mxu0 0
  %75 = vmatprep.subr.bf16.mxu0 0
  %76 = vmatpush1.bf16.msra.mxu0 0
  %77 = vmatprep.subr.bf16.mxu0 0
  %78 = vmatpush1.bf16.msra.mxu0 0
  %79 = vmatprep.subr.bf16.mxu0 0
  %80 = vmatpush1.bf16.msra.mxu0 0
  %81 = vmatprep.subr.bf16.mxu0 0
  %82 = vmatpush1.bf16.msra.mxu0 0
  %83 = vmatprep.mubr.bf16.mxu0 0
  %84 = vmatmul.mubr.bf16.gmra.mrb[0].mxu0 %v49
  %v85 = vpop.f32.mrb[0].mxu0
  %v86 = vadd.f32 0.0, %v85
  %v87 = vpop.f32.mrb[0].mxu0
  %v88 = vpop.f32.mrb[0].mxu0
  %v89 = vadd.f32 0.0, %v88
  %v90 = vpop.f32.mrb[0].mxu0
  %91 = vdwg.mxu0
  %v92 = vadd.f32 %v22, %v86
  %v93 = vadd.f32 %v23, %v89
  %vm94 = vcmask 523264
  %95 = vst.msk [vmem:[#allocation2] sm:$0xff] %vm94, %v92
  %96 = vst.msk [vmem:[#allocation2 + $0x8] sm:$0xff] %vm94, %v93
  // Predicated region
  $region18: #{encoder_forward.17} parent=0 // pred_check
    %p97 = pneg %p15
  $region19: #{encoder_forward.17} parent=0 // pred_check_branch
    %99 = sbr.rel (%p97) target = $region21
  $region20: #{encoder_forward.17} parent=0 // pred_region
    %v100 = vld [vmem:[#allocation2] sm:$0xff]
    %v101 = vld [vmem:[#allocation2 + $0x8] sm:$0xff]
    %v102 = vld [vmem:[%s2] sm:$0x1]
    %v104 = vlaneseq
    %v105 = vshrl.u32 %v104, 7
    %v106 = vsub.s32 0, %v105
    %v107 = vrot.slane %v102, %v106
    %v109 = vadd.f32 %v100, %v107
    %v110 = vadd.f32 %v101, %v107
    %v111 = vmul.f32 %v109, 0.5
    %v112 = vmul.f32 %v110, 0.5
    %v113 = vmul.f32 %v109, 0.70710677
    %v114 = vmul.f32 %v110, 0.70710677
    %v115 = verf.f32.pop %v113
    %v116 = verf.f32.pop %v114
    %v117 = vadd.f32 %v115, 1.0
    %v118 = vadd.f32 %v116, 1.0
    %v119 = vmul.f32 %v111, %v117
    %v120 = vmul.f32 %v112, %v118
    %v121 = vpack.c.bf16 %v120, %v119
    %v123 = vunpack.c.l.b16 %v121
    %v124 = vunpack.c.h.b16 %v121
    %v125 = vpack.c.b16 %v123, %v123
    %v126 = vpack.c.b16 %v124, %v124
    %vm129 = vcmask 519168
    %130 = vst.msk [vmem:[%s3] sm:$0xf] %vm129, %v125
    %131 = vst.msk [vmem:[%s3 + $0x4] sm:$0xf] %vm129, %v126
  $region21: #{encoder_forward.17} parent=0 // pred_fallthru
    _
  // Predicated region
  $region22: #{encoder_forward.17} parent=0 // pred_check
    _
  $region23: #{encoder_forward.17} parent=0 // pred_check_branch
    %133 = sbr.rel (0) target = $region25
  $region24: #{encoder_forward.17} parent=0 // pred_region
    _
  $region25: #{encoder_forward.17} parent=0 // pred_fallthru
    _
  // Predicated region
  $region26: #{encoder_forward.17} parent=0 // pred_check
    _
  $region27: #{encoder_forward.17} parent=0 // pred_check_branch
    %135 = sbr.rel (0) target = $region29
  $region28: #{encoder_forward.17} parent=0 // pred_region
    _
  $region29: #{encoder_forward.17} parent=0 // pred_fallthru
    _

// kernel: encoder_forward.18
$region0: #{encoder_forward.18}
  #allocation0 [shape = 'u32[]', space=smem, size = 0x4, offset = 0x4, fixed_abs, tag = 'smem constant byte address 0x4 - core index']
  #allocation1 [shape = 'u32[144,128]{1,0:T(1,128)}', space=vmem, size = 0x12000, scoped, tag = 'internal scratch']
  #allocation2 [shape = 'f32[16,32]{1,0:T(8,128)}', space=vmem, size = 0x2000, scoped, tag = 'scratch operand']
  %s0 = inlined_call_operand.vmem [shape: bf16[16,64], index: 0, kind: input, shape index: {}]
  %s1 = inlined_call_operand.vmem [shape: bf16[64,32], index: 1, kind: input, shape index: {}]
  %s2 = inlined_call_operand.vmem [shape: f32[1,32], index: 2, kind: input, shape index: {}]
  %s3 = inlined_call_operand.vmem [shape: bf16[16,32], index: 3, kind: input, shape index: {}]
  %s4 = inlined_call_operand.vmem [shape: f32[1,32], index: 4, kind: input, shape index: {}]
  %s5 = inlined_call_operand.vmem [shape: f32[1,32], index: 5, kind: input, shape index: {}]
  %s6 = inlined_call_operand.vmem [shape: bf16[16,32], index: 6, kind: output, shape index: {}]
  %s7 = sld [smem:[#allocation0]]
  $region42: #{encoder_forward.18} parent=0
    _
  %s9 = ssub.s32 1, %s7
  %s10 = scalar_select 0, %s9, %s7
  // Predicated region
  $region2: #{encoder_forward.18} parent=0 // pred_check
    _
  $region3: #{encoder_forward.18} parent=0 // pred_check_branch
    %12 = sbr.rel (0) target = $region5
  $region4: #{encoder_forward.18} parent=0 // pred_region
    _
  $region5: #{encoder_forward.18} parent=0 // pred_fallthru
    _
  // Predicated region
  $region6: #{encoder_forward.18} parent=0 // pred_check
    _
  $region7: #{encoder_forward.18} parent=0 // pred_check_branch
    %14 = sbr.rel (0) target = $region9
  $region8: #{encoder_forward.18} parent=0 // pred_region
    _
  $region9: #{encoder_forward.18} parent=0 // pred_fallthru
    _
  // Predicated region
  $region10: #{encoder_forward.18} parent=0 // pred_check
    _
  $region11: #{encoder_forward.18} parent=0 // pred_check_branch
    %16 = sbr.rel (0) target = $region13
  $region12: #{encoder_forward.18} parent=0 // pred_region
    _
  $region13: #{encoder_forward.18} parent=0 // pred_fallthru
    _
  // Predicated region
  $region14: #{encoder_forward.18} parent=0 // pred_check
    _
  $region15: #{encoder_forward.18} parent=0 // pred_check_branch
    %18 = sbr.rel (0) target = $region17
  $region16: #{encoder_forward.18} parent=0 // pred_region
    _
  $region17: #{encoder_forward.18} parent=0 // pred_fallthru
    _
  // Predicated region
  $region18: #{encoder_forward.18} parent=0 // pred_check
    _
  $region19: #{encoder_forward.18} parent=0 // pred_check_branch
    %20 = sbr.rel (0) target = $region21
  $region20: #{encoder_forward.18} parent=0 // pred_region
    _
  $region21: #{encoder_forward.18} parent=0 // pred_fallthru
    _
  // Predicated region
  $region22: #{encoder_forward.18} parent=0 // pred_check
    _
  $region23: #{encoder_forward.18} parent=0 // pred_check_branch
    %22 = sbr.rel (0) target = $region25
  $region24: #{encoder_forward.18} parent=0 // pred_region
    _
  $region25: #{encoder_forward.18} parent=0 // pred_fallthru
    _
  %p24 = scmp.eq.s32.totalorder 0, 0
  // Predicated region
  $region26: #{encoder_forward.18} parent=0 // pred_check
    %p25 = pneg %p24
  $region27: #{encoder_forward.18} parent=0 // pred_check_branch
    %27 = sbr.rel (%p25) target = $region29
  $region28: #{encoder_forward.18} parent=0 // pred_region
    %vm28 = vcmask 261120
    %29 = vst.msk [vmem:[#allocation2] sm:$0xff] %vm28, 0.0
    %30 = vst.msk [vmem:[#allocation2 + $0x8] sm:$0xff] %vm28, 0.0
  $region29: #{encoder_forward.18} parent=0 // pred_fallthru
    _
  %v31 = vld [vmem:[#allocation2] sm:$0xff]
  %v32 = vld [vmem:[#allocation2 + $0x8] sm:$0xff]
  %v33 = vld [vmem:[%s0] sm:$0xf]
  %v34 = vld [vmem:[%s0 + $0x4] sm:$0xf]
  %v35 = vld [vmem:[%s1] sm:$0xf]
  %v36 = vld [vmem:[%s1 + $0x4] sm:$0xf]
  %v37 = vld [vmem:[%s1 + $0x8] sm:$0xf]
  %v38 = vld [vmem:[%s1 + $0xc] sm:$0xf]
  %v39 = vld [vmem:[%s1 + $0x10] sm:$0xf]
  %v40 = vld [vmem:[%s1 + $0x14] sm:$0xf]
  %v41 = vld [vmem:[%s1 + $0x18] sm:$0xf]
  %v42 = vld [vmem:[%s1 + $0x1c] sm:$0xf]
  %v45 = vunpack.c.l.b16 %v33
  %v46 = vunpack.c.l.b16 %v34
  %v47 = vpack.c.b16 %v46, %v45
  %v56 = vunpack.c.l.b16 %v35
  %v57 = vunpack.c.l.b16 %v36
  %v58 = vunpack.c.l.b16 %v37
  %v59 = vunpack.c.l.b16 %v38
  %v60 = vunpack.c.l.b16 %v39
  %v61 = vunpack.c.l.b16 %v40
  %v62 = vunpack.c.l.b16 %v41
  %v63 = vunpack.c.l.b16 %v42
  %v64 = vpack.c.b16 %v57, %v56
  %v65 = vpack.c.b16 %v59, %v58
  %v66 = vpack.c.b16 %v61, %v60
  %v67 = vpack.c.b16 %v63, %v62
  %vm72 = vcmask 523264
  %v74 = vsel %vm72, %v47, 0
  %76 = vmatprep.subr.bf16.mxu0 0
  %77 = vmatpush1.bf16.msra.mxu0 %v64
  %78 = vmatprep.subr.bf16.mxu0 0
  %79 = vmatpush1.bf16.msra.mxu0 %v65
  %80 = vmatprep.subr.bf16.mxu0 0
  %81 = vmatpush1.bf16.msra.mxu0 %v66
  %82 = vmatprep.subr.bf16.mxu0 0
  %83 = vmatpush1.bf16.msra.mxu0 %v67
  %84 = vmatprep.subr.bf16.mxu0 0
  %85 = vmatpush1.bf16.msra.mxu0 0
  %86 = vmatprep.subr.bf16.mxu0 0
  %87 = vmatpush1.bf16.msra.mxu0 0
  %88 = vmatprep.subr.bf16.mxu0 0
  %89 = vmatpush1.bf16.msra.mxu0 0
  %90 = vmatprep.subr.bf16.mxu0 0
  %91 = vmatpush1.bf16.msra.mxu0 0
  %92 = vmatprep.subr.bf16.mxu0 0
  %93 = vmatpush1.bf16.msra.mxu0 0
  %94 = vmatprep.subr.bf16.mxu0 0
  %95 = vmatpush1.bf16.msra.mxu0 0
  %96 = vmatprep.subr.bf16.mxu0 0
  %97 = vmatpush1.bf16.msra.mxu0 0
  %98 = vmatprep.subr.bf16.mxu0 0
  %99 = vmatpush1.bf16.msra.mxu0 0
  %100 = vmatprep.subr.bf16.mxu0 0
  %101 = vmatpush1.bf16.msra.mxu0 0
  %102 = vmatprep.subr.bf16.mxu0 0
  %103 = vmatpush1.bf16.msra.mxu0 0
  %104 = vmatprep.subr.bf16.mxu0 0
  %105 = vmatpush1.bf16.msra.mxu0 0
  %106 = vmatprep.subr.bf16.mxu0 0
  %107 = vmatpush1.bf16.msra.mxu0 0
  %108 = vmatprep.mubr.bf16.mxu0 0
  %109 = vmatmul.mubr.bf16.gmra.mrb[0].mxu0 %v74
  %v110 = vpop.f32.mrb[0].mxu0
  %v111 = vadd.f32 0.0, %v110
  %v112 = vpop.f32.mrb[0].mxu0
  %v113 = vpop.f32.mrb[0].mxu0
  %v114 = vadd.f32 0.0, %v113
  %v115 = vpop.f32.mrb[0].mxu0
  %116 = vdwg.mxu0
  %v117 = vadd.f32 %v31, %v111
  %v118 = vadd.f32 %v32, %v114
  %vm119 = vcmask 261120
  %120 = vst.msk [vmem:[#allocation2] sm:$0xff] %vm119, %v117
  %121 = vst.msk [vmem:[#allocation2 + $0x8] sm:$0xff] %vm119, %v118
  // Predicated region
  $region30: #{encoder_forward.18} parent=0 // pred_check
    %p122 = pneg %p24
  $region31: #{encoder_forward.18} parent=0 // pred_check_branch
    %124 = sbr.rel (%p122) target = $region33
  $region32: #{encoder_forward.18} parent=0 // pred_region
    %v125 = vld [vmem:[#allocation2] sm:$0xff]
    %v126 = vld [vmem:[#allocation2 + $0x8] sm:$0xff]
    %v127 = vld [vmem:[%s2] sm:$0x1]
    %v129 = vlaneseq
    %v130 = vshrl.u32 %v129, 7
    %v131 = vsub.s32 0, %v130
    %v132 = vrot.slane %v127, %v131
    %v134 = vadd.f32 %v125, %v132
    %v135 = vadd.f32 %v126, %v132
    %v136 = vld [vmem:[%s3] sm:$0xf]
    %v137 = vld [vmem:[%s3 + $0x4] sm:$0xf]
    %v138 = vunpack.c.l.bf16 %v136
    %v139 = vunpack.c.l.bf16 %v137
    %v140 = vadd.f32 %v134, %v138
    %v141 = vadd.f32 %v135, %v139
    %v142 = vsel %vm119, %v140, 0.0
    %143 = vadd.xlane.f32.xlu0 %v142
    %v144 = vpop.xlane.xlu0 %143
    %v145 = vsel %vm119, %v141, 0.0
    %146 = vadd.xlane.f32.xlu0 %v145
    %v147 = vpop.xlane.xlu0 %146
    %v148 = vrcp.pop 32.0
    %v149 = vmul.f32 %v144, %v148
    %v150 = vmul.f32 %v147, %v148
    %v151 = vsub.f32 %v140, %v149
    %v152 = vsub.f32 %v141, %v150
    %v153 = vmul.f32 %v151, %v151
    %v154 = vmul.f32 %v152, %v152
    %v155 = vsel %vm119, %v153, 0.0
    %156 = vadd.xlane.f32.xlu0 %v155
    %v157 = vpop.xlane.xlu0 %156
    %v158 = vsel %vm119, %v154, 0.0
    %159 = vadd.xlane.f32.xlu0 %v158
    %v160 = vpop.xlane.xlu0 %159
    %v161 = vmul.f32 %v157, %v148
    %v162 = vmul.f32 %v160, %v148
    %v163 = vadd.f32 %v161, 1e-12
    %v164 = vadd.f32 %v162, 1e-12
    %v165 = vrsqrt.pop %v163
    %v166 = vrsqrt.pop %v164
    %v167 = vmul.f32 %v151, %v165
    %v168 = vmul.f32 %v152, %v166
    %v169 = vld [vmem:[%s4] sm:$0x1]
    %v171 = vlaneseq
    %v172 = vshrl.u32 %v171, 7
    %v173 = vsub.s32 0, %v172
    %v174 = vrot.slane %v169, %v173
    %v176 = vmul.f32 %v167, %v174
    %v177 = vmul.f32 %v168, %v174
    %v178 = vld [vmem:[%s5] sm:$0x1]
    %v180 = vlaneseq
    %v181 = vshrl.u32 %v180, 7
    %v182 = vsub.s32 0, %v181
    %v183 = vrot.slane %v178, %v182
    %v185 = vadd.f32 %v176, %v183
    %v186 = vadd.f32 %v177, %v183
    %v187 = vpack.c.bf16 %v186, %v185
    %v189 = vunpack.c.l.b16 %v187
    %v190 = vunpack.c.h.b16 %v187
    %v191 = vpack.c.b16 %v189, %v189
    %v192 = vpack.c.b16 %v190, %v190
    %vm195 = vcmask 257024
    %196 = vst.msk [vmem:[%s6] sm:$0xf] %vm195, %v191
    %197 = vst.msk [vmem:[%s6 + $0x4] sm:$0xf] %vm195, %v192
  $region33: #{encoder_forward.18} parent=0 // pred_fallthru
    _
  // Predicated region
  $region34: #{encoder_forward.18} parent=0 // pred_check
    _
  $region35: #{encoder_forward.18} parent=0 // pred_check_branch
    %199 = sbr.rel (0) target = $region37
  $region36: #{encoder_forward.18} parent=0 // pred_region
    _
  $region37: #{encoder_forward.18} parent=0 // pred_fallthru
    _
  // Predicated region
  $region38: #{encoder_forward.18} parent=0 // pred_check
    _
  $region39: #{encoder_forward.18} parent=0 // pred_check_branch
    %201 = sbr.rel (0) target = $region41
  $region40: #{encoder_forward.18} parent=0 // pred_region
    _
  $region41: #{encoder_forward.18} parent=0 // pred_fallthru
    _

// kernel: encoder_forward.25
$region0: #{encoder_forward.25}
  #allocation0 [shape = 'u32[]', space=smem, size = 0x4, offset = 0x4, fixed_abs, tag = 'smem constant byte address 0x4 - core index']
  #allocation1 [shape = 'u32[144,128]{1,0:T(1,128)}', space=vmem, size = 0x12000, scoped, tag = 'internal scratch']
  #allocation2 [shape = 'f32[2,16]{1,0:T(2,128)}', space=vmem, size = 0x400, scoped, tag = 'scratch operand']
  %s0 = inlined_call_operand.vmem [shape: bf16[2,32], index: 0, kind: input, shape index: {}]
  %s1 = inlined_call_operand.vmem [shape: bf16[32,16], index: 1, kind: input, shape index: {}]
  %s2 = inlined_call_operand.vmem [shape: f32[1,16], index: 2, kind: input, shape index: {}]
  %s3 = inlined_call_operand.hbm [shape: f32[2,16], index: 3, kind: output, shape index: {}]
  %s4 = sld [smem:[#allocation0]]
  $region30: #{encoder_forward.25} parent=0
    _
  %s6 = ssub.s32 1, %s4
  %s7 = scalar_select 0, %s6, %s4
  $region1: #{encoder_forward.25} parent=0
    #allocation3 [shape = 'u8[1024]{0}', space=vmem, size = 0x400, scoped, tag = 'output window, operand 0, single buffered']
    #allocation4 [shape = 's32[1]{0}', space=sflag, size = 0x4, scoped, tag = 'scoped memory for encoder_forward.25']
    %8 = vsyncpa [#allocation4], 0
    // Predicated region
    $region2: #{encoder_forward.25} parent=1 // pred_check
      _
    $region3: #{encoder_forward.25} parent=1 // pred_check_branch
      %10 = sbr.rel (0) target = $region5
    $region4: #{encoder_forward.25} parent=1 // pred_region
      _
    $region5: #{encoder_forward.25} parent=1 // pred_fallthru
      _
    // Predicated region
    $region6: #{encoder_forward.25} parent=1 // pred_check
      _
    $region7: #{encoder_forward.25} parent=1 // pred_check_branch
      %12 = sbr.rel (0) target = $region9
    $region8: #{encoder_forward.25} parent=1 // pred_region
      _
    $region9: #{encoder_forward.25} parent=1 // pred_fallthru
      _
    // Predicated region
    $region10: #{encoder_forward.25} parent=1 // pred_check
      _
    $region11: #{encoder_forward.25} parent=1 // pred_check_branch
      %14 = sbr.rel (0) target = $region13
    $region12: #{encoder_forward.25} parent=1 // pred_region
      _
    $region13: #{encoder_forward.25} parent=1 // pred_fallthru
      _
    %p16 = scmp.eq.s32.totalorder 0, 0
    // Predicated region
    $region14: #{encoder_forward.25} parent=1 // pred_check
      %p17 = pneg %p16
    $region15: #{encoder_forward.25} parent=1 // pred_check_branch
      %19 = sbr.rel (%p17) target = $region17
    $region16: #{encoder_forward.25} parent=1 // pred_region
      %vm20 = vcmask 123904
      %21 = vst.msk [vmem:[#allocation2] sm:$0x3] %vm20, 0.0
    $region17: #{encoder_forward.25} parent=1 // pred_fallthru
      _
    %v22 = vld [vmem:[#allocation2] sm:$0x3]
    %v23 = vld [vmem:[%s0] sm:$0x1]
    %v24 = vld [vmem:[%s1] sm:$0xf]
    %v25 = vld [vmem:[%s1 + $0x4] sm:$0xf]
    %v26 = vld [vmem:[%s1 + $0x8] sm:$0xf]
    %v27 = vld [vmem:[%s1 + $0xc] sm:$0xf]
    %v32 = vunpack.c.l.b16 %v24
    %v33 = vunpack.c.l.b16 %v25
    %v34 = vunpack.c.l.b16 %v26
    %v35 = vunpack.c.l.b16 %v27
    %v36 = vpack.c.b16 %v33, %v32
    %v37 = vpack.c.b16 %v35, %v34
    %vm40 = vcmask 261120
    %v42 = vsel %vm40, %v23, 0
    %44 = vmatprep.subr.bf16.mxu0 0
    %45 = vmatpush1.bf16.msra.mxu0 %v36
    %46 = vmatprep.subr.bf16.mxu0 0
    %47 = vmatpush1.bf16.msra.mxu0 %v37
    %48 = vmatprep.subr.bf16.mxu0 0
    %49 = vmatpush1.bf16.msra.mxu0 0
    %50 = vmatprep.subr.bf16.mxu0 0
    %51 = vmatpush1.bf16.msra.mxu0 0
    %52 = vmatprep.subr.bf16.mxu0 0
    %53 = vmatpush1.bf16.msra.mxu0 0
    %54 = vmatprep.subr.bf16.mxu0 0
    %55 = vmatpush1.bf16.msra.mxu0 0
    %56 = vmatprep.subr.bf16.mxu0 0
    %57 = vmatpush1.bf16.msra.mxu0 0
    %58 = vmatprep.subr.bf16.mxu0 0
    %59 = vmatpush1.bf16.msra.mxu0 0
    %60 = vmatprep.subr.bf16.mxu0 0
    %61 = vmatpush1.bf16.msra.mxu0 0
    %62 = vmatprep.subr.bf16.mxu0 0
    %63 = vmatpush1.bf16.msra.mxu0 0
    %64 = vmatprep.subr.bf16.mxu0 0
    %65 = vmatpush1.bf16.msra.mxu0 0
    %66 = vmatprep.subr.bf16.mxu0 0
    %67 = vmatpush1.bf16.msra.mxu0 0
    %68 = vmatprep.subr.bf16.mxu0 0
    %69 = vmatpush1.bf16.msra.mxu0 0
    %70 = vmatprep.subr.bf16.mxu0 0
    %71 = vmatpush1.bf16.msra.mxu0 0
    %72 = vmatprep.subr.bf16.mxu0 0
    %73 = vmatpush1.bf16.msra.mxu0 0
    %74 = vmatprep.subr.bf16.mxu0 0
    %75 = vmatpush1.bf16.msra.mxu0 0
    %76 = vmatprep.mubr.bf16.mxu0 0
    %77 = vmatmul.mubr.bf16.gmra.mrb[0].mxu0 %v42
    %v78 = vpop.f32.mrb[0].mxu0
    %v79 = vadd.f32 0.0, %v78
    %v80 = vpop.f32.mrb[0].mxu0
    %v81 = vpop.f32.mrb[0].mxu0
    %v82 = vpop.f32.mrb[0].mxu0
    %83 = vdwg.mxu0
    %v84 = vadd.f32 %v22, %v79
    %vm85 = vcmask 123904
    %86 = vst.msk [vmem:[#allocation2] sm:$0x3] %vm85, %v84
    // Predicated region
    $region18: #{encoder_forward.25} parent=1 // pred_check
      %p87 = pneg %p16
    $region19: #{encoder_forward.25} parent=1 // pred_check_branch
      %89 = sbr.rel (%p87) target = $region21
    $region20: #{encoder_forward.25} parent=1 // pred_region
      %v90 = vld [vmem:[#allocation2] sm:$0x3]
      %v91 = vld [vmem:[%s2] sm:$0x1]
      %v93 = vlaneseq
      %v94 = vshrl.u32 %v93, 7
      %v95 = vsub.s32 0, %v94
      %v96 = vrot.slane %v91, %v95
      %v98 = vadd.f32 %v90, %v96
      %99 = vst.msk [vmem:[#allocation3] sm:$0x3] %vm85, %v98
    $region21: #{encoder_forward.25} parent=1 // pred_fallthru
      _
    // Predicated region
    $region22: #{encoder_forward.25} parent=1 // pred_check
      _
    $region23: #{encoder_forward.25} parent=1 // pred_check_branch
      %101 = sbr.rel (0) target = $region25
    $region24: #{encoder_forward.25} parent=1 // pred_region
      %s103 = ssub.s32 32, 32
      %104 = vsyncadd [#allocation4], %s103
      %s106 = sshll.u32 [#allocation3], 4
      %s107 = int_to_ptr.vmem [resolvable:$true] %s106
      %109 = dma.vmem_to_hbm [thread:$0]  %s107, 32, %s3, [#allocation4]
    $region25: #{encoder_forward.25} parent=1 // pred_fallthru
      _
    // Predicated region
    $region26: #{encoder_forward.25} parent=1 // pred_check
      _
    $region27: #{encoder_forward.25} parent=1 // pred_check_branch
      %111 = sbr.rel (0) target = $region29
    $region28: #{encoder_forward.25} parent=1 // pred_region
      %112 = dma.done [#allocation4], 32
    $region29: #{encoder_forward.25} parent=1 // pred_fallthru
      _
    %113 = vsyncpa [#allocation4], 1

// kernel: encoder_forward.24
$region0: #{encoder_forward.24}
  #allocation0 [shape = 'u32[]', space=smem, size = 0x4, offset = 0x4, fixed_abs, tag = 'smem constant byte address 0x4 - core index']
  #allocation1 [shape = 'u32[144,128]{1,0:T(1,128)}', space=vmem, size = 0x12000, scoped, tag = 'internal scratch']
  #allocation2 [shape = 'f32[2,32]{1,0:T(2,128)}', space=vmem, size = 0x400, scoped, tag = 'scratch operand']
  %s0 = inlined_call_operand.vmem [shape: bf16[2,32], index: 0, kind: input, shape index: {}]
  %s1 = inlined_call_operand.vmem [shape: bf16[32,32], index: 1, kind: input, shape index: {}]
  %s2 = inlined_call_operand.vmem [shape: f32[1,32], index: 2, kind: input, shape index: {}]
  %s3 = inlined_call_operand.vmem [shape: bf16[2,32], index: 3, kind: output, shape index: {}]
  %s4 = sld [smem:[#allocation0]]
  $region30: #{encoder_forward.24} parent=0
    _
  %s6 = ssub.s32 1, %s4
  %s7 = scalar_select 0, %s6, %s4
  // Predicated region
  $region2: #{encoder_forward.24} parent=0 // pred_check
    _
  $region3: #{encoder_forward.24} parent=0 // pred_check_branch
    %9 = sbr.rel (0) target = $region5
  $region4: #{encoder_forward.24} parent=0 // pred_region
    _
  $region5: #{encoder_forward.24} parent=0 // pred_fallthru
    _
  // Predicated region
  $region6: #{encoder_forward.24} parent=0 // pred_check
    _
  $region7: #{encoder_forward.24} parent=0 // pred_check_branch
    %11 = sbr.rel (0) target = $region9
  $region8: #{encoder_forward.24} parent=0 // pred_region
    _
  $region9: #{encoder_forward.24} parent=0 // pred_fallthru
    _
  // Predicated region
  $region10: #{encoder_forward.24} parent=0 // pred_check
    _
  $region11: #{encoder_forward.24} parent=0 // pred_check_branch
    %13 = sbr.rel (0) target = $region13
  $region12: #{encoder_forward.24} parent=0 // pred_region
    _
  $region13: #{encoder_forward.24} parent=0 // pred_fallthru
    _
  %p15 = scmp.eq.s32.totalorder 0, 0
  // Predicated region
  $region14: #{encoder_forward.24} parent=0 // pred_check
    %p16 = pneg %p15
  $region15: #{encoder_forward.24} parent=0 // pred_check_branch
    %18 = sbr.rel (%p16) target = $region17
  $region16: #{encoder_forward.24} parent=0 // pred_region
    %vm19 = vcmask 254976
    %20 = vst.msk [vmem:[#allocation2] sm:$0x3] %vm19, 0.0
  $region17: #{encoder_forward.24} parent=0 // pred_fallthru
    _
  %v21 = vld [vmem:[#allocation2] sm:$0x3]
  %v22 = vld [vmem:[%s0] sm:$0x1]
  %v23 = vld [vmem:[%s1] sm:$0xf]
  %v24 = vld [vmem:[%s1 + $0x4] sm:$0xf]
  %v25 = vld [vmem:[%s1 + $0x8] sm:$0xf]
  %v26 = vld [vmem:[%s1 + $0xc] sm:$0xf]
  %v31 = vunpack.c.l.b16 %v23
  %v32 = vunpack.c.l.b16 %v24
  %v33 = vunpack.c.l.b16 %v25
  %v34 = vunpack.c.l.b16 %v26
  %v35 = vpack.c.b16 %v32, %v31
  %v36 = vpack.c.b16 %v34, %v33
  %vm39 = vcmask 261120
  %v41 = vsel %vm39, %v22, 0
  %43 = vmatprep.subr.bf16.mxu0 0
  %44 = vmatpush1.bf16.msra.mxu0 %v35
  %45 = vmatprep.subr.bf16.mxu0 0
  %46 = vmatpush1.bf16.msra.mxu0 %v36
  %47 = vmatprep.subr.bf16.mxu0 0
  %48 = vmatpush1.bf16.msra.mxu0 0
  %49 = vmatprep.subr.bf16.mxu0 0
  %50 = vmatpush1.bf16.msra.mxu0 0
  %51 = vmatprep.subr.bf16.mxu0 0
  %52 = vmatpush1.bf16.msra.mxu0 0
  %53 = vmatprep.subr.bf16.mxu0 0
  %54 = vmatpush1.bf16.msra.mxu0 0
  %55 = vmatprep.subr.bf16.mxu0 0
  %56 = vmatpush1.bf16.msra.mxu0 0
  %57 = vmatprep.subr.bf16.mxu0 0
  %58 = vmatpush1.bf16.msra.mxu0 0
  %59 = vmatprep.subr.bf16.mxu0 0
  %60 = vmatpush1.bf16.msra.mxu0 0
  %61 = vmatprep.subr.bf16.mxu0 0
  %62 = vmatpush1.bf16.msra.mxu0 0
  %63 = vmatprep.subr.bf16.mxu0 0
  %64 = vmatpush1.bf16.msra.mxu0 0
  %65 = vmatprep.subr.bf16.mxu0 0
  %66 = vmatpush1.bf16.msra.mxu0 0
  %67 = vmatprep.subr.bf16.mxu0 0
  %68 = vmatpush1.bf16.msra.mxu0 0
  %69 = vmatprep.subr.bf16.mxu0 0
  %70 = vmatpush1.bf16.msra.mxu0 0
  %71 = vmatprep.subr.bf16.mxu0 0
  %72 = vmatpush1.bf16.msra.mxu0 0
  %73 = vmatprep.subr.bf16.mxu0 0
  %74 = vmatpush1.bf16.msra.mxu0 0
  %75 = vmatprep.mubr.bf16.mxu0 0
  %76 = vmatmul.mubr.bf16.gmra.mrb[0].mxu0 %v41
  %v77 = vpop.f32.mrb[0].mxu0
  %v78 = vadd.f32 0.0, %v77
  %v79 = vpop.f32.mrb[0].mxu0
  %v80 = vpop.f32.mrb[0].mxu0
  %v81 = vpop.f32.mrb[0].mxu0
  %82 = vdwg.mxu0
  %v83 = vadd.f32 %v21, %v78
  %vm84 = vcmask 254976
  %85 = vst.msk [vmem:[#allocation2] sm:$0x3] %vm84, %v83
  // Predicated region
  $region18: #{encoder_forward.24} parent=0 // pred_check
    %p86 = pneg %p15
  $region19: #{encoder_forward.24} parent=0 // pred_check_branch
    %88 = sbr.rel (%p86) target = $region21
  $region20: #{encoder_forward.24} parent=0 // pred_region
    %v89 = vld [vmem:[#allocation2] sm:$0x3]
    %v90 = vld [vmem:[%s2] sm:$0x1]
    %v92 = vlaneseq
    %v93 = vshrl.u32 %v92, 7
    %v94 = vsub.s32 0, %v93
    %v95 = vrot.slane %v90, %v94
    %v97 = vadd.f32 %v89, %v95
    %v98 = vtanh.pop %v97
    %v99 = vpack.c.bf16 %v98, %v98
    %vm100 = vcmask 253952
    %101 = vst.msk [vmem:[%s3] sm:$0x1] %vm100, %v99
  $region21: #{encoder_forward.24} parent=0 // pred_fallthru
    _
  // Predicated region
  $region22: #{encoder_forward.24} parent=0 // pred_check
    _
  $region23: #{encoder_forward.24} parent=0 // pred_check_branch
    %103 = sbr.rel (0) target = $region25
  $region24: #{encoder_forward.24} parent=0 // pred_region
    _
  $region25: #{encoder_forward.24} parent=0 // pred_fallthru
    _
  // Predicated region
  $region26: #{encoder_forward.24} parent=0 // pred_check
    _
  $region27: #{encoder_forward.24} parent=0 // pred_check_branch
    %105 = sbr.rel (0) target = $region29
  $region28: #{encoder_forward.24} parent=0 // pred_region
    _
  $region29: #{encoder_forward.24} parent=0 // pred_fallthru
    _

</llo_original>
